<compile_context>
chip_gen: v7x
topology: tpu7x:2x2x1
jax: 0.10.0
libtpu: 0.0.40
codegen_flags: <defaults>
</compile_context>

<pallas_src>
import functools

import jax
import jax.numpy as jnp
import numpy as np
from jax import lax
from jax.experimental import pallas as pl
from jax.experimental.pallas import tpu as pltpu

_BN_EPS = 1e-5


# ----------------------------------------------------------------------------
# Fused kernel
# ----------------------------------------------------------------------------
def _basic_block_kernel(x_ref, w1_ref, s1_ref, b1_ref, w2_ref, s2_ref, b2_ref,
                        *rest, stride, Hout, Wout, WoutP, has_sc_conv):
    # x_ref : (1, HP, WQ, s*Cin) bf16   padded input, W stride-phase folded
    # w1_ref: (3, n_ow1*s*Cin, C) bf16  grouped + K-flattened conv1 weights
    # w2_ref: (3, 3*C, C) bf16          K-flattened conv2 weights
    # s*/b* : (1, C) f32                folded BN scale / bias
    # wsc   : (s*Cin, C) bf16           grouped 1x1 shortcut weights (optional)
    # o_ref : (1, Hout*WoutP, C) bf16
    # y1p_ref: (Hout+2, WoutP+2, C) bf16  zero-bordered conv2 input slab
    if has_sc_conv:
        wsc_ref, ssc_ref, bsc_ref, o_ref, y1p_ref = rest
    else:
        o_ref, y1p_ref = rest

    s = stride
    M = Hout * WoutP
    C = s1_ref.shape[-1]
    sCin = x_ref.shape[-1]
    n_ow1 = (3 + s - 1) // s

    # ---- load the (padded, phase-folded) input tile once --------------------
    xv = x_ref[0]                                     # (HP, WQ, s*Cin) bf16
    HP = xv.shape[0]
    xv = xv.reshape(HP // s, s, xv.shape[1], sCin)    # (Hq, Hphase, WQ, s*Cin)

    def fat_conv3x3(get_rows, w_ref, n_ow, cg):
        """One fat K = n_ow*cg matmul per kh (per-kh im2col via lane concat)."""
        acc = jnp.zeros((M, C), jnp.float32)
        for kh in range(3):
            rows = get_rows(kh)                       # (Hout, >=WoutP+n_ow-1, cg)
            patch = jnp.concatenate(
                [rows[:, ow:ow + WoutP, :] for ow in range(n_ow)], axis=-1)
            acc = acc + jnp.dot(patch.reshape(M, n_ow * cg), w_ref[kh],
                                preferred_element_type=jnp.float32)
        return acc

    # ---- stage 1: conv1 (3x3, stride s, pad 1) + BN1 + ReLU ------------------
    acc1 = fat_conv3x3(lambda kh: xv[kh // s:kh // s + Hout, kh % s],
                       w1_ref, n_ow1, sCin)
    y1 = jnp.maximum(acc1 * s1_ref[...] + b1_ref[...], 0.0)
    y1 = y1.reshape(Hout, WoutP, C)
    if WoutP != Wout:                                 # zero the sublane-pad cols
        col = lax.broadcasted_iota(jnp.int32, (Hout, WoutP, C), 1)
        y1 = jnp.where(col < Wout, y1, 0.0)
    y1 = y1.astype(jnp.bfloat16)

    # zero-bordered conv2 input slab: built in-register, ONE aligned full store
    zc = jnp.zeros((Hout, 1, C), jnp.bfloat16)
    zr = jnp.zeros((1, WoutP + 2, C), jnp.bfloat16)
    y1p_ref[...] = jnp.concatenate(
        [zr, jnp.concatenate([zc, y1, zc], axis=1), zr], axis=0)

    # ---- shortcut branch (stays in VMEM) -------------------------------------
    ph, off = 1 % s, 1 // s                           # tap (kh=1, kw=1) of x_pad
    rows_sc = xv[off:off + Hout, ph][:, off:off + WoutP, :]
    if has_sc_conv:                                   # 1x1 stride-s conv + BN
        sc = jnp.dot(rows_sc.reshape(M, sCin), wsc_ref[...],
                     preferred_element_type=jnp.float32)
        sc = sc * ssc_ref[...] + bsc_ref[...]
    else:                                             # identity (s == 1, Cin == C)
        sc = rows_sc.astype(jnp.float32).reshape(M, C)

    # ---- stage 2: conv2 (3x3, stride 1, pad 1) + BN2 + residual + ReLU -------
    acc2 = fat_conv3x3(lambda kh: y1p_ref[pl.ds(kh, Hout), :, :], w2_ref, 3, C)
    out = acc2 * s2_ref[...] + b2_ref[...] + sc
    o_ref[0] = jnp.maximum(out, 0.0).astype(o_ref.dtype)


# ----------------------------------------------------------------------------
# Host-side (one-off) layout prep
# ----------------------------------------------------------------------------
def _fold_bn(bn):
    scale = bn["gamma"] * lax.rsqrt(bn["var"] + _BN_EPS)
    bias = bn["beta"] - bn["mean"] * scale
    return (scale.reshape(1, -1).astype(jnp.float32),
            bias.reshape(1, -1).astype(jnp.float32))


def _group_weights(w, s):
    """(3,3,Cin,C) -> (3, n_ow*s*Cin, C) bf16.

    Taps are grouped by output-column offset (ow = kw // s); phases not covered
    by a tap get zero weights, and the (ow, phase, cin) axes are flattened into
    one fat contraction axis matching the kernel's per-kh im2col concat order.
    """
    KH, KW, Cin, C = w.shape
    n_ow = -(-KW // s)
    wg = jnp.zeros((KH, n_ow, s, Cin, C), w.dtype)
    for kw in range(KW):
        wg = wg.at[:, kw // s, kw % s].set(w[:, kw])
    return wg.reshape(KH, n_ow * s * Cin, C).astype(jnp.bfloat16)


def _rup(x, m):
    return -(-x // m) * m


def basic_block_forward_nhwc(x_nhwc, params, *, stride):
    """NHWC in -> NHWC bf16 out (inter-block activation format). Eval-mode BN."""
    s = stride
    N, H, W, Cin = x_nhwc.shape
    C = params["w1"].shape[-1]
    Hout = (H - 1) // s + 1
    Wout = (W - 1) // s + 1
    WoutP = _rup(Wout, 8)                             # sublane-pad output width
    n_ow1 = -(-3 // s)

    # single bf16 pad; the W stride-phase fold into channels is a free reshape
    HP = _rup(H + 2, s)
    WP = _rup(max(W + 2, (WoutP - 1) * s + 3), s)
    pad_hb, pad_wb = HP - (H + 1), WP - (W + 1)
    WQ = WP // s
    assert HP % s == 0 and WP % s == 0
    assert WQ >= WoutP + n_ow1 - 1 and WQ >= 1 // s + WoutP
    assert HP // s >= 2 // s + Hout
    xr = jnp.pad(x_nhwc.astype(jnp.bfloat16),
                 ((0, 0), (1, pad_hb), (1, pad_wb), (0, 0)))
    xr = xr.reshape(N, HP, WQ, s * Cin)

    s1, b1 = _fold_bn(params["bn1"])
    s2, b2 = _fold_bn(params["bn2"])
    w1g = _group_weights(params["w1"], s)             # (3, n_ow1*s*Cin, C)
    w2g = _group_weights(params["w2"], 1)             # (3, 3*C, C)
    K1, K2 = w1g.shape[1], w2g.shape[1]

    has_sc = "w_sc" in params
    in_specs = [
        pl.BlockSpec((1, HP, WQ, s * Cin), lambda n: (n, 0, 0, 0)),
        pl.BlockSpec((3, K1, C), lambda n: (0, 0, 0)),
        pl.BlockSpec((1, C), lambda n: (0, 0)),
        pl.BlockSpec((1, C), lambda n: (0, 0)),
        pl.BlockSpec((3, K2, C), lambda n: (0, 0, 0)),
        pl.BlockSpec((1, C), lambda n: (0, 0)),
        pl.BlockSpec((1, C), lambda n: (0, 0)),
    ]
    args = [xr, w1g, s1, b1, w2g, s2, b2]
    if has_sc:
        ssc, bsc = _fold_bn(params["bn_sc"])
        wsc = params["w_sc"][0, 0]                    # (Cin, C)
        wscg = jnp.zeros((s, Cin, C), wsc.dtype).at[1 % s].set(wsc)
        wscg = wscg.reshape(s * Cin, C).astype(jnp.bfloat16)
        in_specs += [pl.BlockSpec((s * Cin, C), lambda n: (0, 0)),
                     pl.BlockSpec((1, C), lambda n: (0, 0)),
                     pl.BlockSpec((1, C), lambda n: (0, 0))]
        args += [wscg, ssc, bsc]

    M = Hout * WoutP

    # VMEM budget from actual tile-padded block / scratch / live sizes (+50%),
    # capped well below v7x's 64 MiB physical VMEM.                       [#6]
    bf, f4, LN, SL = 2, 4, 128, 16
    x_blk = HP * _rup(WQ, SL) * _rup(s * Cin, LN) * bf
    o_blk = _rup(M, SL) * _rup(C, LN) * bf
    w_byt = (3 * _rup(K1, SL) * _rup(C, LN) + 3 * _rup(K2, SL) * _rup(C, LN)
             + (_rup(s * Cin, SL) * _rup(C, LN) if has_sc else 0)) * bf
    scr = (Hout + 2) * _rup(WoutP + 2, SL) * _rup(C, LN) * bf
    live = (4 * _rup(M, SL) * _rup(C, LN) * f4
            + _rup(M, SL) * _rup(max(K1, K2), LN) * bf + scr)
    vmem_limit = min(int(1.5 * (2 * (x_blk + o_blk) + 2 * w_byt + scr + live))
                     + (4 << 20), 48 << 20)

    kernel = functools.partial(_basic_block_kernel, stride=s, Hout=Hout,
                               Wout=Wout, WoutP=WoutP, has_sc_conv=has_sc)

    out_flat = pl.pallas_call(
        kernel,
        out_shape=jax.ShapeDtypeStruct((N, M, C), jnp.bfloat16),
        grid=(N,),
        in_specs=in_specs,
        out_specs=pl.BlockSpec((1, M, C), lambda n: (n, 0, 0)),
        scratch_shapes=[pltpu.VMEM((Hout + 2, WoutP + 2, C), jnp.bfloat16)],
        compiler_params=pltpu.CompilerParams(
            dimension_semantics=("parallel",),
            vmem_limit_bytes=vmem_limit),
    )(*args)

    out = out_flat.reshape(N, Hout, WoutP, C)
    if WoutP != Wout:
        out = out[:, :, :Wout, :]
    return out


@functools.partial(jax.jit, static_argnames=("stride",))
def basic_block_forward(x_nchw, params, *, stride):
    """Matches BasicBlock.forward (eval-mode BN).  NCHW f32 in / out."""
    x = jnp.transpose(x_nchw, (0, 2, 3, 1))           # NCHW -> NHWC
    out = basic_block_forward_nhwc(x, params, stride=stride)
    return jnp.transpose(out, (0, 3, 1, 2)).astype(jnp.float32)


# ----------------------------------------------------------------------------
# Parameters (same as an eval-mode nn.BatchNorm2d / bias-free Conv2d block)
# ----------------------------------------------------------------------------
def _init_bn(key, c):
    k1, k2, k3, k4 = jax.random.split(key, 4)
    return dict(
        gamma=1.0 + 0.1 * jax.random.normal(k1, (c,), jnp.float32),
        beta=0.1 * jax.random.normal(k2, (c,), jnp.float32),
        mean=0.1 * jax.random.normal(k3, (c,), jnp.float32),
        var=0.5 + jax.random.uniform(k4, (c,), jnp.float32),
    )


def init_basic_block_params(key, in_planes, planes, stride):
    ks = jax.random.split(key, 8)
    fan1 = 3 * 3 * in_planes
    fan2 = 3 * 3 * planes
    params = dict(
        w1=jax.random.normal(ks[0], (3, 3, in_planes, planes), jnp.float32) / np.sqrt(fan1),
        bn1=_init_bn(ks[1], planes),
        w2=jax.random.normal(ks[2], (3, 3, planes, planes), jnp.float32) / np.sqrt(fan2),
        bn2=_init_bn(ks[3], planes),
    )
    if stride != 1 or in_planes != planes:
        params["w_sc"] = jax.random.normal(
            ks[4], (1, 1, in_planes, planes), jnp.float32) / np.sqrt(in_planes)
        params["bn_sc"] = _init_bn(ks[5], planes)
    return params


# ----------------------------------------------------------------------------
# Pure-JAX reference mirroring the kernel numerics
# (bf16 conv operands, f32 accum/BN, bf16 inter-block + output activations)
# ----------------------------------------------------------------------------
def _conv_ref(x, w, stride, padding):
    return lax.conv_general_dilated(
        x.astype(jnp.bfloat16), w.astype(jnp.bfloat16),
        (stride, stride), [(padding, padding), (padding, padding)],
        dimension_numbers=("NHWC", "HWIO", "NHWC"),
        preferred_element_type=jnp.float32)


def basic_block_reference(x_nchw, params, *, stride):
    x = jnp.transpose(x_nchw, (0, 2, 3, 1)).astype(jnp.float32)
    s1, b1 = _fold_bn(params["bn1"])
    s2, b2 = _fold_bn(params["bn2"])
    out = jnp.maximum(_conv_ref(x, params["w1"], stride, 1) * s1 + b1, 0.0)
    if "w_sc" in params:
        ss, sb = _fold_bn(params["bn_sc"])
        sc = _conv_ref(x, params["w_sc"], stride, 0) * ss + sb
    else:
        sc = x.astype(jnp.bfloat16).astype(jnp.float32)
    out = jnp.maximum(_conv_ref(out, params["w2"], 1, 1) * s2 + b2 + sc, 0.0)
    out = out.astype(jnp.bfloat16).astype(jnp.float32)   # kernel emits bf16
    return jnp.transpose(out, (0, 3, 1, 2))


if __name__ == "__main__":
    key = jax.random.PRNGKey(0)
    kx, kp1, kp2, kp3, kp4 = jax.random.split(key, 5)
    TOL = dict(rtol=2e-2, atol=2e-2)

    # Case 1: strided block with 1x1-conv shortcut (stride=2, 4 -> 8 planes).
    N, in_planes, planes, H, W, stride = 2, 4, 8, 16, 16, 2
    x = jax.random.normal(kx, (N, in_planes, H, W), jnp.float32)    # NCHW
    params = init_basic_block_params(kp1, in_planes, planes, stride)
    out = jax.block_until_ready(basic_block_forward(x, params, stride=stride))
    assert out.shape == (N, planes, H // stride, W // stride), out.shape
    ref = basic_block_reference(x, params, stride=stride)
    np.testing.assert_allclose(np.asarray(out), np.asarray(ref), **TOL)

    # Case 2: identity-shortcut block (stride=1, channels unchanged, aligned W).
    x2 = jax.random.normal(kx, (N, planes, H, W), jnp.float32)
    params2 = init_basic_block_params(kp2, planes, planes, 1)
    out2 = jax.block_until_ready(basic_block_forward(x2, params2, stride=1))
    assert out2.shape == (N, planes, H, W), out2.shape
    ref2 = basic_block_reference(x2, params2, stride=1)
    np.testing.assert_allclose(np.asarray(out2), np.asarray(ref2), **TOL)

    # Case 3: identity shortcut with Wout=14 (not a multiple of 8) ->
    #         exercises the sublane pad (WoutP=16) + masked pad-column path.
    x3 = jax.random.normal(kx, (N, planes, 14, 14), jnp.float32)
    params3 = init_basic_block_params(kp3, planes, planes, 1)
    out3 = jax.block_until_ready(basic_block_forward(x3, params3, stride=1))
    assert out3.shape == (N, planes, 14, 14), out3.shape
    ref3 = basic_block_reference(x3, params3, stride=1)
    np.testing.assert_allclose(np.asarray(out3), np.asarray(ref3), **TOL)

    # Case 4: strided shortcut-conv block with unaligned output width
    #         (14x14 -> 7x7, WoutP=8): mask path + stride-phase fold + 1x1 conv.
    x4 = jax.random.normal(kx, (N, in_planes, 14, 14), jnp.float32)
    params4 = init_basic_block_params(kp4, in_planes, planes, 2)
    out4 = jax.block_until_ready(basic_block_forward(x4, params4, stride=2))
    assert out4.shape == (N, planes, 7, 7), out4.shape
    ref4 = basic_block_reference(x4, params4, stride=2)
    np.testing.assert_allclose(np.asarray(out4), np.asarray(ref4), **TOL)

    print("KERNEL_OK")
</pallas_src>

<mosaic_0001>
module attributes {stable_mosaic.version = 11 : i64} {
  func.func @_basic_block_kernel(%arg0: i32, %arg1: memref<1x18x9x8xbf16, #tpu.memory_space<vmem>>, %arg2: memref<3x16x8xbf16, #tpu.memory_space<vmem>>, %arg3: memref<1x8xf32, #tpu.memory_space<vmem>>, %arg4: memref<1x8xf32, #tpu.memory_space<vmem>>, %arg5: memref<3x24x8xbf16, #tpu.memory_space<vmem>>, %arg6: memref<1x8xf32, #tpu.memory_space<vmem>>, %arg7: memref<1x8xf32, #tpu.memory_space<vmem>>, %arg8: memref<8x8xbf16, #tpu.memory_space<vmem>>, %arg9: memref<1x8xf32, #tpu.memory_space<vmem>>, %arg10: memref<1x8xf32, #tpu.memory_space<vmem>>, %arg11: memref<1x64x8xbf16, #tpu.memory_space<vmem>>, %arg12: memref<10x10x8xbf16, #tpu.memory_space<vmem>>) attributes {dimension_semantics = [#tpu.dimension_semantics<parallel>], iteration_bounds = array<i64: 2>, scalar_prefetch = 0 : i64, scratch_operands = 1 : i64, tpu.core_type = #tpu.core_type<tc>, window_params = [{transform_indices = @transform_0, window_bounds = array<i64: 1, 18, 9, 8>}, {pipeline_mode = #tpu.pipeline_mode<synchronous>, transform_indices = @transform_1, window_bounds = array<i64: 3, 16, 8>}, {pipeline_mode = #tpu.pipeline_mode<synchronous>, transform_indices = @transform_2, window_bounds = array<i64: 1, 8>}, {pipeline_mode = #tpu.pipeline_mode<synchronous>, transform_indices = @transform_3, window_bounds = array<i64: 1, 8>}, {pipeline_mode = #tpu.pipeline_mode<synchronous>, transform_indices = @transform_4, window_bounds = array<i64: 3, 24, 8>}, {pipeline_mode = #tpu.pipeline_mode<synchronous>, transform_indices = @transform_5, window_bounds = array<i64: 1, 8>}, {pipeline_mode = #tpu.pipeline_mode<synchronous>, transform_indices = @transform_6, window_bounds = array<i64: 1, 8>}, {pipeline_mode = #tpu.pipeline_mode<synchronous>, transform_indices = @transform_7, window_bounds = array<i64: 8, 8>}, {pipeline_mode = #tpu.pipeline_mode<synchronous>, transform_indices = @transform_8, window_bounds = array<i64: 1, 8>}, {pipeline_mode = #tpu.pipeline_mode<synchronous>, transform_indices = @transform_9, window_bounds = array<i64: 1, 8>}, {transform_indices = @transform_10, window_bounds = array<i64: 1, 64, 8>}]} {
    %c0 = arith.constant 0 : index
    %c0_0 = arith.constant 0 : index
    %c0_1 = arith.constant 0 : index
    %c0_2 = arith.constant 0 : index
    %0 = vector.load %arg1[%c0, %c0_0, %c0_1, %c0_2] : memref<1x18x9x8xbf16, #tpu.memory_space<vmem>>, vector<1x18x9x8xbf16>
    %1 = vector.shape_cast %0 : vector<1x18x9x8xbf16> to vector<18x9x8xbf16>
    %2 = vector.shape_cast %1 : vector<18x9x8xbf16> to vector<9x2x9x8xbf16>
    %cst = arith.constant 0.000000e+00 : f32
    %3 = vector.broadcast %cst : f32 to vector<64x8xf32>
    %4 = vector.extract_strided_slice %2 {offsets = [0, 0, 0, 0], sizes = [8, 1, 9, 8], strides = [1, 1, 1, 1]} : vector<9x2x9x8xbf16> to vector<8x1x9x8xbf16>
    %5 = vector.shape_cast %4 : vector<8x1x9x8xbf16> to vector<8x9x8xbf16>
    %6 = vector.extract_strided_slice %5 {offsets = [0, 0, 0], sizes = [8, 8, 8], strides = [1, 1, 1]} : vector<8x9x8xbf16> to vector<8x8x8xbf16>
    %7 = vector.extract_strided_slice %5 {offsets = [0, 1, 0], sizes = [8, 8, 8], strides = [1, 1, 1]} : vector<8x9x8xbf16> to vector<8x8x8xbf16>
    %8 = tpu.concatenate %6, %7 in 2 : vector<8x8x8xbf16>, vector<8x8x8xbf16> -> vector<8x8x16xbf16>
    %9 = vector.shape_cast %8 : vector<8x8x16xbf16> to vector<64x16xbf16>
    %c0_3 = arith.constant 0 : index
    %c0_4 = arith.constant 0 : index
    %c0_5 = arith.constant 0 : index
    %10 = vector.load %arg2[%c0_3, %c0_4, %c0_5] : memref<3x16x8xbf16, #tpu.memory_space<vmem>>, vector<1x16x8xbf16>
    %11 = vector.shape_cast %10 : vector<1x16x8xbf16> to vector<16x8xbf16>
    %cst_6 = arith.constant dense<0.000000e+00> : vector<64x8xf32>
    %12 = tpu.matmul %9, %11, %cst_6 {dimension_numbers = #tpu.dot_dimension_numbers<[1], [0], [0], [1], [0, 0, 1, 1], [], []>} : vector<64x16xbf16>, vector<16x8xbf16>, vector<64x8xf32> -> vector<64x8xf32>
    %13 = arith.addf %3, %12 : vector<64x8xf32>
    %14 = vector.extract_strided_slice %2 {offsets = [0, 1, 0, 0], sizes = [8, 1, 9, 8], strides = [1, 1, 1, 1]} : vector<9x2x9x8xbf16> to vector<8x1x9x8xbf16>
    %15 = vector.shape_cast %14 : vector<8x1x9x8xbf16> to vector<8x9x8xbf16>
    %16 = vector.extract_strided_slice %15 {offsets = [0, 0, 0], sizes = [8, 8, 8], strides = [1, 1, 1]} : vector<8x9x8xbf16> to vector<8x8x8xbf16>
    %17 = vector.extract_strided_slice %15 {offsets = [0, 1, 0], sizes = [8, 8, 8], strides = [1, 1, 1]} : vector<8x9x8xbf16> to vector<8x8x8xbf16>
    %18 = tpu.concatenate %16, %17 in 2 : vector<8x8x8xbf16>, vector<8x8x8xbf16> -> vector<8x8x16xbf16>
    %19 = vector.shape_cast %18 : vector<8x8x16xbf16> to vector<64x16xbf16>
    %c1 = arith.constant 1 : index
    %c0_7 = arith.constant 0 : index
    %c0_8 = arith.constant 0 : index
    %20 = vector.load %arg2[%c1, %c0_7, %c0_8] : memref<3x16x8xbf16, #tpu.memory_space<vmem>>, vector<1x16x8xbf16>
    %21 = vector.shape_cast %20 : vector<1x16x8xbf16> to vector<16x8xbf16>
    %cst_9 = arith.constant dense<0.000000e+00> : vector<64x8xf32>
    %22 = tpu.matmul %19, %21, %cst_9 {dimension_numbers = #tpu.dot_dimension_numbers<[1], [0], [0], [1], [0, 0, 1, 1], [], []>} : vector<64x16xbf16>, vector<16x8xbf16>, vector<64x8xf32> -> vector<64x8xf32>
    %23 = arith.addf %13, %22 : vector<64x8xf32>
    %24 = vector.extract_strided_slice %2 {offsets = [1, 0, 0, 0], sizes = [8, 1, 9, 8], strides = [1, 1, 1, 1]} : vector<9x2x9x8xbf16> to vector<8x1x9x8xbf16>
    %25 = vector.shape_cast %24 : vector<8x1x9x8xbf16> to vector<8x9x8xbf16>
    %26 = vector.extract_strided_slice %25 {offsets = [0, 0, 0], sizes = [8, 8, 8], strides = [1, 1, 1]} : vector<8x9x8xbf16> to vector<8x8x8xbf16>
    %27 = vector.extract_strided_slice %25 {offsets = [0, 1, 0], sizes = [8, 8, 8], strides = [1, 1, 1]} : vector<8x9x8xbf16> to vector<8x8x8xbf16>
    %28 = tpu.concatenate %26, %27 in 2 : vector<8x8x8xbf16>, vector<8x8x8xbf16> -> vector<8x8x16xbf16>
    %29 = vector.shape_cast %28 : vector<8x8x16xbf16> to vector<64x16xbf16>
    %c2 = arith.constant 2 : index
    %c0_10 = arith.constant 0 : index
    %c0_11 = arith.constant 0 : index
    %30 = vector.load %arg2[%c2, %c0_10, %c0_11] : memref<3x16x8xbf16, #tpu.memory_space<vmem>>, vector<1x16x8xbf16>
    %31 = vector.shape_cast %30 : vector<1x16x8xbf16> to vector<16x8xbf16>
    %cst_12 = arith.constant dense<0.000000e+00> : vector<64x8xf32>
    %32 = tpu.matmul %29, %31, %cst_12 {dimension_numbers = #tpu.dot_dimension_numbers<[1], [0], [0], [1], [0, 0, 1, 1], [], []>} : vector<64x16xbf16>, vector<16x8xbf16>, vector<64x8xf32> -> vector<64x8xf32>
    %33 = arith.addf %23, %32 : vector<64x8xf32>
    %c0_13 = arith.constant 0 : index
    %c0_14 = arith.constant 0 : index
    %34 = vector.load %arg3[%c0_13, %c0_14] : memref<1x8xf32, #tpu.memory_space<vmem>>, vector<1x8xf32>
    %35 = vector.broadcast %34 : vector<1x8xf32> to vector<64x8xf32>
    %36 = arith.mulf %33, %35 : vector<64x8xf32>
    %c0_15 = arith.constant 0 : index
    %c0_16 = arith.constant 0 : index
    %37 = vector.load %arg4[%c0_15, %c0_16] : memref<1x8xf32, #tpu.memory_space<vmem>>, vector<1x8xf32>
    %38 = vector.broadcast %37 : vector<1x8xf32> to vector<64x8xf32>
    %39 = arith.addf %36, %38 : vector<64x8xf32>
    %cst_17 = arith.constant 0.000000e+00 : f32
    %40 = vector.broadcast %cst_17 : f32 to vector<64x8xf32>
    %41 = arith.maximumf %39, %40 : vector<64x8xf32>
    %42 = vector.shape_cast %41 : vector<64x8xf32> to vector<8x8x8xf32>
    %43 = arith.truncf %42 : vector<8x8x8xf32> to vector<8x8x8xbf16>
    %cst_18 = arith.constant 0.000000e+00 : bf16
    %44 = vector.broadcast %cst_18 : bf16 to vector<8x1x8xbf16>
    %cst_19 = arith.constant 0.000000e+00 : bf16
    %45 = vector.broadcast %cst_19 : bf16 to vector<1x10x8xbf16>
    %46 = tpu.concatenate %44, %43, %44 in 1 : vector<8x1x8xbf16>, vector<8x8x8xbf16>, vector<8x1x8xbf16> -> vector<8x10x8xbf16>
    %47 = tpu.concatenate %45, %46, %45 in 0 : vector<1x10x8xbf16>, vector<8x10x8xbf16>, vector<1x10x8xbf16> -> vector<10x10x8xbf16>
    %c0_20 = arith.constant 0 : index
    %c0_21 = arith.constant 0 : index
    %c0_22 = arith.constant 0 : index
    %48 = vector.load %arg12[%c0_20, %c0_21, %c0_22] : memref<10x10x8xbf16, #tpu.memory_space<vmem>>, vector<10x10x8xbf16>
    tpu.vector_store %arg12[%c0_20, %c0_21, %c0_22], %47 {strides = array<i32>} : memref<10x10x8xbf16, #tpu.memory_space<vmem>>, vector<10x10x8xbf16>,
    %49 = vector.extract_strided_slice %2 {offsets = [0, 1, 0, 0], sizes = [8, 1, 9, 8], strides = [1, 1, 1, 1]} : vector<9x2x9x8xbf16> to vector<8x1x9x8xbf16>
    %50 = vector.shape_cast %49 : vector<8x1x9x8xbf16> to vector<8x9x8xbf16>
    %51 = vector.extract_strided_slice %50 {offsets = [0, 0, 0], sizes = [8, 8, 8], strides = [1, 1, 1]} : vector<8x9x8xbf16> to vector<8x8x8xbf16>
    %52 = vector.shape_cast %51 : vector<8x8x8xbf16> to vector<64x8xbf16>
    %c0_23 = arith.constant 0 : index
    %c0_24 = arith.constant 0 : index
    %53 = vector.load %arg8[%c0_23, %c0_24] : memref<8x8xbf16, #tpu.memory_space<vmem>>, vector<8x8xbf16>
    %cst_25 = arith.constant dense<0.000000e+00> : vector<64x8xf32>
    %54 = tpu.matmul %52, %53, %cst_25 {dimension_numbers = #tpu.dot_dimension_numbers<[1], [0], [0], [1], [0, 0, 1, 1], [], []>} : vector<64x8xbf16>, vector<8x8xbf16>, vector<64x8xf32> -> vector<64x8xf32>
    %c0_26 = arith.constant 0 : index
    %c0_27 = arith.constant 0 : index
    %55 = vector.load %arg9[%c0_26, %c0_27] : memref<1x8xf32, #tpu.memory_space<vmem>>, vector<1x8xf32>
    %56 = vector.broadcast %55 : vector<1x8xf32> to vector<64x8xf32>
    %57 = arith.mulf %54, %56 : vector<64x8xf32>
    %c0_28 = arith.constant 0 : index
    %c0_29 = arith.constant 0 : index
    %58 = vector.load %arg10[%c0_28, %c0_29] : memref<1x8xf32, #tpu.memory_space<vmem>>, vector<1x8xf32>
    %59 = vector.broadcast %58 : vector<1x8xf32> to vector<64x8xf32>
    %60 = arith.addf %57, %59 : vector<64x8xf32>
    %cst_30 = arith.constant 0.000000e+00 : f32
    %61 = vector.broadcast %cst_30 : f32 to vector<64x8xf32>
    %c0_31 = arith.constant 0 : index
    %c0_32 = arith.constant 0 : index
    %c0_33 = arith.constant 0 : index
    %62 = vector.load %arg12[%c0_31, %c0_32, %c0_33] : memref<10x10x8xbf16, #tpu.memory_space<vmem>>, vector<8x10x8xbf16>
    %63 = vector.extract_strided_slice %62 {offsets = [0, 0, 0], sizes = [8, 8, 8], strides = [1, 1, 1]} : vector<8x10x8xbf16> to vector<8x8x8xbf16>
    %64 = vector.extract_strided_slice %62 {offsets = [0, 1, 0], sizes = [8, 8, 8], strides = [1, 1, 1]} : vector<8x10x8xbf16> to vector<8x8x8xbf16>
    %65 = vector.extract_strided_slice %62 {offsets = [0, 2, 0], sizes = [8, 8, 8], strides = [1, 1, 1]} : vector<8x10x8xbf16> to vector<8x8x8xbf16>
    %66 = tpu.concatenate %63, %64, %65 in 2 : vector<8x8x8xbf16>, vector<8x8x8xbf16>, vector<8x8x8xbf16> -> vector<8x8x24xbf16>
    %67 = vector.shape_cast %66 : vector<8x8x24xbf16> to vector<64x24xbf16>
    %c0_34 = arith.constant 0 : index
    %c0_35 = arith.constant 0 : index
    %c0_36 = arith.constant 0 : index
    %68 = vector.load %arg5[%c0_34, %c0_35, %c0_36] : memref<3x24x8xbf16, #tpu.memory_space<vmem>>, vector<1x24x8xbf16>
    %69 = vector.shape_cast %68 : vector<1x24x8xbf16> to vector<24x8xbf16>
    %cst_37 = arith.constant dense<0.000000e+00> : vector<64x8xf32>
    %70 = tpu.matmul %67, %69, %cst_37 {dimension_numbers = #tpu.dot_dimension_numbers<[1], [0], [0], [1], [0, 0, 1, 1], [], []>} : vector<64x24xbf16>, vector<24x8xbf16>, vector<64x8xf32> -> vector<64x8xf32>
    %71 = arith.addf %61, %70 : vector<64x8xf32>
    %c1_38 = arith.constant 1 : index
    %c0_39 = arith.constant 0 : index
    %c0_40 = arith.constant 0 : index
    %72 = vector.load %arg12[%c1_38, %c0_39, %c0_40] : memref<10x10x8xbf16, #tpu.memory_space<vmem>>, vector<8x10x8xbf16>
    %73 = vector.extract_strided_slice %72 {offsets = [0, 0, 0], sizes = [8, 8, 8], strides = [1, 1, 1]} : vector<8x10x8xbf16> to vector<8x8x8xbf16>
    %74 = vector.extract_strided_slice %72 {offsets = [0, 1, 0], sizes = [8, 8, 8], strides = [1, 1, 1]} : vector<8x10x8xbf16> to vector<8x8x8xbf16>
    %75 = vector.extract_strided_slice %72 {offsets = [0, 2, 0], sizes = [8, 8, 8], strides = [1, 1, 1]} : vector<8x10x8xbf16> to vector<8x8x8xbf16>
    %76 = tpu.concatenate %73, %74, %75 in 2 : vector<8x8x8xbf16>, vector<8x8x8xbf16>, vector<8x8x8xbf16> -> vector<8x8x24xbf16>
    %77 = vector.shape_cast %76 : vector<8x8x24xbf16> to vector<64x24xbf16>
    %c1_41 = arith.constant 1 : index
    %c0_42 = arith.constant 0 : index
    %c0_43 = arith.constant 0 : index
    %78 = vector.load %arg5[%c1_41, %c0_42, %c0_43] : memref<3x24x8xbf16, #tpu.memory_space<vmem>>, vector<1x24x8xbf16>
    %79 = vector.shape_cast %78 : vector<1x24x8xbf16> to vector<24x8xbf16>
    %cst_44 = arith.constant dense<0.000000e+00> : vector<64x8xf32>
    %80 = tpu.matmul %77, %79, %cst_44 {dimension_numbers = #tpu.dot_dimension_numbers<[1], [0], [0], [1], [0, 0, 1, 1], [], []>} : vector<64x24xbf16>, vector<24x8xbf16>, vector<64x8xf32> -> vector<64x8xf32>
    %81 = arith.addf %71, %80 : vector<64x8xf32>
    %c2_45 = arith.constant 2 : index
    %c0_46 = arith.constant 0 : index
    %c0_47 = arith.constant 0 : index
    %82 = vector.load %arg12[%c2_45, %c0_46, %c0_47] : memref<10x10x8xbf16, #tpu.memory_space<vmem>>, vector<8x10x8xbf16>
    %83 = vector.extract_strided_slice %82 {offsets = [0, 0, 0], sizes = [8, 8, 8], strides = [1, 1, 1]} : vector<8x10x8xbf16> to vector<8x8x8xbf16>
    %84 = vector.extract_strided_slice %82 {offsets = [0, 1, 0], sizes = [8, 8, 8], strides = [1, 1, 1]} : vector<8x10x8xbf16> to vector<8x8x8xbf16>
    %85 = vector.extract_strided_slice %82 {offsets = [0, 2, 0], sizes = [8, 8, 8], strides = [1, 1, 1]} : vector<8x10x8xbf16> to vector<8x8x8xbf16>
    %86 = tpu.concatenate %83, %84, %85 in 2 : vector<8x8x8xbf16>, vector<8x8x8xbf16>, vector<8x8x8xbf16> -> vector<8x8x24xbf16>
    %87 = vector.shape_cast %86 : vector<8x8x24xbf16> to vector<64x24xbf16>
    %c2_48 = arith.constant 2 : index
    %c0_49 = arith.constant 0 : index
    %c0_50 = arith.constant 0 : index
    %88 = vector.load %arg5[%c2_48, %c0_49, %c0_50] : memref<3x24x8xbf16, #tpu.memory_space<vmem>>, vector<1x24x8xbf16>
    %89 = vector.shape_cast %88 : vector<1x24x8xbf16> to vector<24x8xbf16>
    %cst_51 = arith.constant dense<0.000000e+00> : vector<64x8xf32>
    %90 = tpu.matmul %87, %89, %cst_51 {dimension_numbers = #tpu.dot_dimension_numbers<[1], [0], [0], [1], [0, 0, 1, 1], [], []>} : vector<64x24xbf16>, vector<24x8xbf16>, vector<64x8xf32> -> vector<64x8xf32>
    %91 = arith.addf %81, %90 : vector<64x8xf32>
    %c0_52 = arith.constant 0 : index
    %c0_53 = arith.constant 0 : index
    %92 = vector.load %arg6[%c0_52, %c0_53] : memref<1x8xf32, #tpu.memory_space<vmem>>, vector<1x8xf32>
    %93 = vector.broadcast %92 : vector<1x8xf32> to vector<64x8xf32>
    %94 = arith.mulf %91, %93 : vector<64x8xf32>
    %c0_54 = arith.constant 0 : index
    %c0_55 = arith.constant 0 : index
    %95 = vector.load %arg7[%c0_54, %c0_55] : memref<1x8xf32, #tpu.memory_space<vmem>>, vector<1x8xf32>
    %96 = vector.broadcast %95 : vector<1x8xf32> to vector<64x8xf32>
    %97 = arith.addf %94, %96 : vector<64x8xf32>
    %98 = arith.addf %97, %60 : vector<64x8xf32>
    %cst_56 = arith.constant 0.000000e+00 : f32
    %99 = vector.broadcast %cst_56 : f32 to vector<64x8xf32>
    %100 = arith.maximumf %98, %99 : vector<64x8xf32>
    %101 = arith.truncf %100 : vector<64x8xf32> to vector<64x8xbf16>
    %c0_57 = arith.constant 0 : index
    %c0_58 = arith.constant 0 : index
    %c0_59 = arith.constant 0 : index
    %102 = vector.load %arg11[%c0_57, %c0_58, %c0_59] : memref<1x64x8xbf16, #tpu.memory_space<vmem>>, vector<1x64x8xbf16>
    %103 = vector.shape_cast %102 : vector<1x64x8xbf16> to vector<64x8xbf16>
    %104 = vector.shape_cast %101 : vector<64x8xbf16> to vector<1x64x8xbf16>
    tpu.vector_store %arg11[%c0_57, %c0_58, %c0_59], %104 {strides = array<i32>} : memref<1x64x8xbf16, #tpu.memory_space<vmem>>, vector<1x64x8xbf16>,
    return
  }
  func.func @transform_0(%arg0: i32) -> (i32, i32, i32, i32) {
    %c0_i32 = arith.constant 0 : i32
    %c0_i32_0 = arith.constant 0 : i32
    %c0_i32_1 = arith.constant 0 : i32
    %c0_i32_2 = arith.constant 0 : i32
    return %arg0, %c0_i32, %c0_i32_0, %c0_i32_1 : i32, i32, i32, i32
  }
  func.func @transform_1(%arg0: i32) -> (i32, i32, i32) {
    %c0_i32 = arith.constant 0 : i32
    %c0_i32_0 = arith.constant 0 : i32
    %c0_i32_1 = arith.constant 0 : i32
    %c0_i32_2 = arith.constant 0 : i32
    return %c0_i32, %c0_i32_0, %c0_i32_1 : i32, i32, i32
  }
  func.func @transform_2(%arg0: i32) -> (i32, i32) {
    %c0_i32 = arith.constant 0 : i32
    %c0_i32_0 = arith.constant 0 : i32
    %c0_i32_1 = arith.constant 0 : i32
    return %c0_i32, %c0_i32_0 : i32, i32
  }
  func.func @transform_3(%arg0: i32) -> (i32, i32) {
    %c0_i32 = arith.constant 0 : i32
    %c0_i32_0 = arith.constant 0 : i32
    %c0_i32_1 = arith.constant 0 : i32
    return %c0_i32, %c0_i32_0 : i32, i32
  }
  func.func @transform_4(%arg0: i32) -> (i32, i32, i32) {
    %c0_i32 = arith.constant 0 : i32
    %c0_i32_0 = arith.constant 0 : i32
    %c0_i32_1 = arith.constant 0 : i32
    %c0_i32_2 = arith.constant 0 : i32
    return %c0_i32, %c0_i32_0, %c0_i32_1 : i32, i32, i32
  }
  func.func @transform_5(%arg0: i32) -> (i32, i32) {
    %c0_i32 = arith.constant 0 : i32
    %c0_i32_0 = arith.constant 0 : i32
    %c0_i32_1 = arith.constant 0 : i32
    return %c0_i32, %c0_i32_0 : i32, i32
  }
  func.func @transform_6(%arg0: i32) -> (i32, i32) {
    %c0_i32 = arith.constant 0 : i32
    %c0_i32_0 = arith.constant 0 : i32
    %c0_i32_1 = arith.constant 0 : i32
    return %c0_i32, %c0_i32_0 : i32, i32
  }
  func.func @transform_7(%arg0: i32) -> (i32, i32) {
    %c0_i32 = arith.constant 0 : i32
    %c0_i32_0 = arith.constant 0 : i32
    %c0_i32_1 = arith.constant 0 : i32
    return %c0_i32, %c0_i32_0 : i32, i32
  }
  func.func @transform_8(%arg0: i32) -> (i32, i32) {
    %c0_i32 = arith.constant 0 : i32
    %c0_i32_0 = arith.constant 0 : i32
    %c0_i32_1 = arith.constant 0 : i32
    return %c0_i32, %c0_i32_0 : i32, i32
  }
  func.func @transform_9(%arg0: i32) -> (i32, i32) {
    %c0_i32 = arith.constant 0 : i32
    %c0_i32_0 = arith.constant 0 : i32
    %c0_i32_1 = arith.constant 0 : i32
    return %c0_i32, %c0_i32_0 : i32, i32
  }
  func.func @transform_10(%arg0: i32) -> (i32, i32, i32) {
    %c0_i32 = arith.constant 0 : i32
    %c0_i32_0 = arith.constant 0 : i32
    %c0_i32_1 = arith.constant 0 : i32
    return %arg0, %c0_i32, %c0_i32_0 : i32, i32, i32
  }
}

</mosaic_0001>

<llo_original>
// kernel: basic_block_forward.1
$region0: #{basic_block_forward.1}
  #allocation0 [shape = 'u32[]', space=smem, size = 0x4, offset = 0x4, fixed_abs, tag = 'smem constant byte address 0x4 - core index']
  #allocation1 [shape = 'u32[144,128]{1,0:T(1,128)}', space=vmem, size = 0x12000, scoped, tag = 'internal scratch']
  #allocation2 [shape = 'bf16[10,10,8]{2,1,0:T(8,128)(2,1)}', space=vmem, size = 0xa000, scoped, tag = 'scratch operand']
  %s0 = inlined_call_operand.vmem [shape: bf16[2,18,9,8], index: 0, kind: input, shape index: {}]
  %s1 = inlined_call_operand.vmem [shape: bf16[3,16,8], index: 1, kind: input, shape index: {}]
  %s2 = inlined_call_operand.vmem [shape: f32[1,8], index: 2, kind: input, shape index: {}]
  %s3 = inlined_call_operand.vmem [shape: f32[1,8], index: 3, kind: input, shape index: {}]
  %s4 = inlined_call_operand.vmem [shape: bf16[3,24,8], index: 4, kind: input, shape index: {}]
  %s5 = inlined_call_operand.vmem [shape: f32[1,8], index: 5, kind: input, shape index: {}]
  %s6 = inlined_call_operand.vmem [shape: f32[1,8], index: 6, kind: input, shape index: {}]
  %s7 = inlined_call_operand.vmem [shape: bf16[8,8], index: 7, kind: input, shape index: {}]
  %s8 = inlined_call_operand.vmem [shape: f32[1,8], index: 8, kind: input, shape index: {}]
  %s9 = inlined_call_operand.vmem [shape: f32[1,8], index: 9, kind: input, shape index: {}]
  %s10 = inlined_call_operand.vmem [shape: bf16[2,64,8], index: 10, kind: output, shape index: {}]
  %s11 = sld [smem:[#allocation0]]
  $region73: #{basic_block_forward.1} parent=0
    _
  %s13 = ssub.s32 1, %s11
  %s14 = scalar_select 0, %s13, %s11
  loop: start=0, step=1, limit=4
  $region2: #{basic_block_forward.1} parent=0 // loop_pre_header
    _
  $region3: #{basic_block_forward.1} parent=0 // loop_header
    %s16 = sphi 0, %s20
    %p17 = scmp.ge.s32.totalorder %s16, 4
    %s26 = sphi 0, %s28
    %s29 = sphi 0, %s26
    %s30 = sphi 0, %s29
    %s46 = sphi 0, %s30
    %s50 = sphi 0, %s50
    %s52 = sphi 0, %s50
    %s53 = sphi 0, %s52
    %s67 = sphi 0, %s53
    %s71 = sphi 0, %s71
    %s73 = sphi 0, %s71
    %s74 = sphi 0, %s73
    %s88 = sphi 0, %s74
    %s92 = sphi 0, %s92
    %s94 = sphi 0, %s92
    %s95 = sphi 0, %s94
    %s109 = sphi 0, %s95
    %s113 = sphi 0, %s113
    %s115 = sphi 0, %s113
    %s116 = sphi 0, %s115
    %s130 = sphi 0, %s116
    %s134 = sphi 0, %s134
    %s136 = sphi 0, %s134
    %s137 = sphi 0, %s136
    %s151 = sphi 0, %s137
    %s155 = sphi 0, %s155
    %s157 = sphi 0, %s155
    %s158 = sphi 0, %s157
    %s172 = sphi 0, %s158
    %s176 = sphi 0, %s176
    %s178 = sphi 0, %s176
    %s179 = sphi 0, %s178
    %s193 = sphi 0, %s179
    %s197 = sphi 0, %s197
    %s199 = sphi 0, %s197
    %s200 = sphi 0, %s199
    %s214 = sphi 0, %s200
    %s218 = sphi 0, %s218
    %s220 = sphi 0, %s218
    %s221 = sphi 0, %s220
    %s235 = sphi 0, %s221
    %s241 = sphi 0, %s243
    %s244 = sphi 0, %s241
    %s245 = sphi 0, %s244
    %s261 = sphi 0, %s245
  $region4: #{basic_block_forward.1} parent=0 // loop_header_branch
    %19 = sbr.rel (%p17) target = $region8
  $region5: #{basic_block_forward.1} parent=0 // loop_body
    %s21 = ssub.s32 %s16, 1
    %s22 = ssub.s32 %s16, 2
    %s23 = sadd.s32 %s16, 1
    %s24 = ssub.s32 %s16, %s23
    %p25 = scmp.eq.s32.totalorder %s24, 0
    %s27 = sadd.s32 %s26, 1
    %s28 = scalar_select %p25, %s26, %s27
    %p31 = pneg %p25
    %p32 = scmp.eq.s32.totalorder %s16, 1
    %p33 = por %p31, %p32
    %p34 = scmp.ne.s32.totalorder %s26, %s29
    %p35 = scmp.eq.s32.totalorder %s16, 0
    %p36 = por %p34, %p35
    %p37 = scmp.ne.s32.totalorder %s26, %s29
    %p38 = scmp.eq.s32.totalorder %s21, 1
    %p39 = por %p37, %p38
    %p40 = scmp.ne.s32.totalorder %s29, %s30
    %p41 = scmp.eq.s32.totalorder %s21, 0
    %p42 = por %p40, %p41
    %p43 = scmp.ne.s32.totalorder %s29, %s30
    %p44 = scmp.eq.s32.totalorder %s22, 1
    %p45 = por %p43, %p44
    %p47 = scmp.ne.s32.totalorder %s30, %s46
    %p48 = scmp.eq.s32.totalorder %s22, 0
    %p49 = por %p47, %p48
    %s51 = sadd.s32 %s50, 1
    %p54 = scmp.eq.s32.totalorder %s16, 1
    %p55 = scmp.ne.s32.totalorder %s50, %s52
    %p56 = scmp.eq.s32.totalorder %s16, 0
    %p57 = por %p55, %p56
    %p58 = scmp.ne.s32.totalorder %s50, %s52
    %p59 = scmp.eq.s32.totalorder %s21, 1
    %p60 = por %p58, %p59
    %p61 = scmp.ne.s32.totalorder %s52, %s53
    %p62 = scmp.eq.s32.totalorder %s21, 0
    %p63 = por %p61, %p62
    %p64 = scmp.ne.s32.totalorder %s52, %s53
    %p65 = scmp.eq.s32.totalorder %s22, 1
    %p66 = por %p64, %p65
    %p68 = scmp.ne.s32.totalorder %s53, %s67
    %p69 = scmp.eq.s32.totalorder %s22, 0
    %p70 = por %p68, %p69
    %s72 = sadd.s32 %s71, 1
    %p75 = scmp.eq.s32.totalorder %s16, 1
    %p76 = scmp.ne.s32.totalorder %s71, %s73
    %p77 = scmp.eq.s32.totalorder %s16, 0
    %p78 = por %p76, %p77
    %p79 = scmp.ne.s32.totalorder %s71, %s73
    %p80 = scmp.eq.s32.totalorder %s21, 1
    %p81 = por %p79, %p80
    %p82 = scmp.ne.s32.totalorder %s73, %s74
    %p83 = scmp.eq.s32.totalorder %s21, 0
    %p84 = por %p82, %p83
    %p85 = scmp.ne.s32.totalorder %s73, %s74
    %p86 = scmp.eq.s32.totalorder %s22, 1
    %p87 = por %p85, %p86
    %p89 = scmp.ne.s32.totalorder %s74, %s88
    %p90 = scmp.eq.s32.totalorder %s22, 0
    %p91 = por %p89, %p90
    %s93 = sadd.s32 %s92, 1
    %p96 = scmp.eq.s32.totalorder %s16, 1
    %p97 = scmp.ne.s32.totalorder %s92, %s94
    %p98 = scmp.eq.s32.totalorder %s16, 0
    %p99 = por %p97, %p98
    %p100 = scmp.ne.s32.totalorder %s92, %s94
    %p101 = scmp.eq.s32.totalorder %s21, 1
    %p102 = por %p100, %p101
    %p103 = scmp.ne.s32.totalorder %s94, %s95
    %p104 = scmp.eq.s32.totalorder %s21, 0
    %p105 = por %p103, %p104
    %p106 = scmp.ne.s32.totalorder %s94, %s95
    %p107 = scmp.eq.s32.totalorder %s22, 1
    %p108 = por %p106, %p107
    %p110 = scmp.ne.s32.totalorder %s95, %s109
    %p111 = scmp.eq.s32.totalorder %s22, 0
    %p112 = por %p110, %p111
    %s114 = sadd.s32 %s113, 1
    %p117 = scmp.eq.s32.totalorder %s16, 1
    %p118 = scmp.ne.s32.totalorder %s113, %s115
    %p119 = scmp.eq.s32.totalorder %s16, 0
    %p120 = por %p118, %p119
    %p121 = scmp.ne.s32.totalorder %s113, %s115
    %p122 = scmp.eq.s32.totalorder %s21, 1
    %p123 = por %p121, %p122
    %p124 = scmp.ne.s32.totalorder %s115, %s116
    %p125 = scmp.eq.s32.totalorder %s21, 0
    %p126 = por %p124, %p125
    %p127 = scmp.ne.s32.totalorder %s115, %s116
    %p128 = scmp.eq.s32.totalorder %s22, 1
    %p129 = por %p127, %p128
    %p131 = scmp.ne.s32.totalorder %s116, %s130
    %p132 = scmp.eq.s32.totalorder %s22, 0
    %p133 = por %p131, %p132
    %s135 = sadd.s32 %s134, 1
    %p138 = scmp.eq.s32.totalorder %s16, 1
    %p139 = scmp.ne.s32.totalorder %s134, %s136
    %p140 = scmp.eq.s32.totalorder %s16, 0
    %p141 = por %p139, %p140
    %p142 = scmp.ne.s32.totalorder %s134, %s136
    %p143 = scmp.eq.s32.totalorder %s21, 1
    %p144 = por %p142, %p143
    %p145 = scmp.ne.s32.totalorder %s136, %s137
    %p146 = scmp.eq.s32.totalorder %s21, 0
    %p147 = por %p145, %p146
    %p148 = scmp.ne.s32.totalorder %s136, %s137
    %p149 = scmp.eq.s32.totalorder %s22, 1
    %p150 = por %p148, %p149
    %p152 = scmp.ne.s32.totalorder %s137, %s151
    %p153 = scmp.eq.s32.totalorder %s22, 0
    %p154 = por %p152, %p153
    %s156 = sadd.s32 %s155, 1
    %p159 = scmp.eq.s32.totalorder %s16, 1
    %p160 = scmp.ne.s32.totalorder %s155, %s157
    %p161 = scmp.eq.s32.totalorder %s16, 0
    %p162 = por %p160, %p161
    %p163 = scmp.ne.s32.totalorder %s155, %s157
    %p164 = scmp.eq.s32.totalorder %s21, 1
    %p165 = por %p163, %p164
    %p166 = scmp.ne.s32.totalorder %s157, %s158
    %p167 = scmp.eq.s32.totalorder %s21, 0
    %p168 = por %p166, %p167
    %p169 = scmp.ne.s32.totalorder %s157, %s158
    %p170 = scmp.eq.s32.totalorder %s22, 1
    %p171 = por %p169, %p170
    %p173 = scmp.ne.s32.totalorder %s158, %s172
    %p174 = scmp.eq.s32.totalorder %s22, 0
    %p175 = por %p173, %p174
    %s177 = sadd.s32 %s176, 1
    %p180 = scmp.eq.s32.totalorder %s16, 1
    %p181 = scmp.ne.s32.totalorder %s176, %s178
    %p182 = scmp.eq.s32.totalorder %s16, 0
    %p183 = por %p181, %p182
    %p184 = scmp.ne.s32.totalorder %s176, %s178
    %p185 = scmp.eq.s32.totalorder %s21, 1
    %p186 = por %p184, %p185
    %p187 = scmp.ne.s32.totalorder %s178, %s179
    %p188 = scmp.eq.s32.totalorder %s21, 0
    %p189 = por %p187, %p188
    %p190 = scmp.ne.s32.totalorder %s178, %s179
    %p191 = scmp.eq.s32.totalorder %s22, 1
    %p192 = por %p190, %p191
    %p194 = scmp.ne.s32.totalorder %s179, %s193
    %p195 = scmp.eq.s32.totalorder %s22, 0
    %p196 = por %p194, %p195
    %s198 = sadd.s32 %s197, 1
    %p201 = scmp.eq.s32.totalorder %s16, 1
    %p202 = scmp.ne.s32.totalorder %s197, %s199
    %p203 = scmp.eq.s32.totalorder %s16, 0
    %p204 = por %p202, %p203
    %p205 = scmp.ne.s32.totalorder %s197, %s199
    %p206 = scmp.eq.s32.totalorder %s21, 1
    %p207 = por %p205, %p206
    %p208 = scmp.ne.s32.totalorder %s199, %s200
    %p209 = scmp.eq.s32.totalorder %s21, 0
    %p210 = por %p208, %p209
    %p211 = scmp.ne.s32.totalorder %s199, %s200
    %p212 = scmp.eq.s32.totalorder %s22, 1
    %p213 = por %p211, %p212
    %p215 = scmp.ne.s32.totalorder %s200, %s214
    %p216 = scmp.eq.s32.totalorder %s22, 0
    %p217 = por %p215, %p216
    %s219 = sadd.s32 %s218, 1
    %p222 = scmp.eq.s32.totalorder %s16, 1
    %p223 = scmp.ne.s32.totalorder %s218, %s220
    %p224 = scmp.eq.s32.totalorder %s16, 0
    %p225 = por %p223, %p224
    %p226 = scmp.ne.s32.totalorder %s218, %s220
    %p227 = scmp.eq.s32.totalorder %s21, 1
    %p228 = por %p226, %p227
    %p229 = scmp.ne.s32.totalorder %s220, %s221
    %p230 = scmp.eq.s32.totalorder %s21, 0
    %p231 = por %p229, %p230
    %p232 = scmp.ne.s32.totalorder %s220, %s221
    %p233 = scmp.eq.s32.totalorder %s22, 1
    %p234 = por %p232, %p233
    %p236 = scmp.ne.s32.totalorder %s221, %s235
    %p237 = scmp.eq.s32.totalorder %s22, 0
    %p238 = por %p236, %p237
    %s239 = ssub.s32 %s16, %s23
    %p240 = scmp.eq.s32.totalorder %s239, 0
    %s242 = sadd.s32 %s241, 1
    %s243 = scalar_select %p240, %s241, %s242
    %p246 = pneg %p240
    %p247 = scmp.eq.s32.totalorder %s16, 1
    %p248 = por %p246, %p247
    %p249 = scmp.ne.s32.totalorder %s241, %s244
    %p250 = scmp.eq.s32.totalorder %s16, 0
    %p251 = por %p249, %p250
    %p252 = scmp.ne.s32.totalorder %s241, %s244
    %p253 = scmp.eq.s32.totalorder %s21, 1
    %p254 = por %p252, %p253
    %p255 = scmp.ne.s32.totalorder %s244, %s245
    %p256 = scmp.eq.s32.totalorder %s21, 0
    %p257 = por %p255, %p256
    %p258 = scmp.ne.s32.totalorder %s244, %s245
    %p259 = scmp.eq.s32.totalorder %s22, 1
    %p260 = por %p258, %p259
    %p262 = scmp.ne.s32.totalorder %s245, %s261
    %p263 = scmp.eq.s32.totalorder %s22, 0
    %p264 = por %p262, %p263
    %p265 = scmp.le.s32.totalorder 1, %s16
    %p266 = scmp.lt.s32.totalorder %s16, 3
    %p267 = pnand %p265, %p266
    %p268 = pneg %p267
    // Predicated region
    $region9: #{basic_block_forward.1} parent=5 // pred_check
      _
    $region10: #{basic_block_forward.1} parent=5 // pred_check_branch
      %270 = sbr.rel (%p267) target = $region12
    $region11: #{basic_block_forward.1} parent=5 // pred_region
      %s271 = ssub.s32 %s16, 1
      // Predicated region
      $region13: #{basic_block_forward.1} parent=11 // pred_check
        %p272 = pneg %p63
      $region14: #{basic_block_forward.1} parent=11 // pred_check_branch
        %274 = sbr.rel (%p272) target = $region16
      $region15: #{basic_block_forward.1} parent=11 // pred_region
        _
      $region16: #{basic_block_forward.1} parent=11 // pred_fallthru
        _
      // Predicated region
      $region17: #{basic_block_forward.1} parent=11 // pred_check
        %p275 = pneg %p84
      $region18: #{basic_block_forward.1} parent=11 // pred_check_branch
        %277 = sbr.rel (%p275) target = $region20
      $region19: #{basic_block_forward.1} parent=11 // pred_region
        _
      $region20: #{basic_block_forward.1} parent=11 // pred_fallthru
        _
      // Predicated region
      $region21: #{basic_block_forward.1} parent=11 // pred_check
        %p278 = pneg %p105
      $region22: #{basic_block_forward.1} parent=11 // pred_check_branch
        %280 = sbr.rel (%p278) target = $region24
      $region23: #{basic_block_forward.1} parent=11 // pred_region
        _
      $region24: #{basic_block_forward.1} parent=11 // pred_fallthru
        _
      // Predicated region
      $region25: #{basic_block_forward.1} parent=11 // pred_check
        %p281 = pneg %p126
      $region26: #{basic_block_forward.1} parent=11 // pred_check_branch
        %283 = sbr.rel (%p281) target = $region28
      $region27: #{basic_block_forward.1} parent=11 // pred_region
        _
      $region28: #{basic_block_forward.1} parent=11 // pred_fallthru
        _
      // Predicated region
      $region29: #{basic_block_forward.1} parent=11 // pred_check
        %p284 = pneg %p147
      $region30: #{basic_block_forward.1} parent=11 // pred_check_branch
        %286 = sbr.rel (%p284) target = $region32
      $region31: #{basic_block_forward.1} parent=11 // pred_region
        _
      $region32: #{basic_block_forward.1} parent=11 // pred_fallthru
        _
      // Predicated region
      $region33: #{basic_block_forward.1} parent=11 // pred_check
        %p287 = pneg %p168
      $region34: #{basic_block_forward.1} parent=11 // pred_check_branch
        %289 = sbr.rel (%p287) target = $region36
      $region35: #{basic_block_forward.1} parent=11 // pred_region
        _
      $region36: #{basic_block_forward.1} parent=11 // pred_fallthru
        _
      // Predicated region
      $region37: #{basic_block_forward.1} parent=11 // pred_check
        %p290 = pneg %p189
      $region38: #{basic_block_forward.1} parent=11 // pred_check_branch
        %292 = sbr.rel (%p290) target = $region40
      $region39: #{basic_block_forward.1} parent=11 // pred_region
        _
      $region40: #{basic_block_forward.1} parent=11 // pred_fallthru
        _
      // Predicated region
      $region41: #{basic_block_forward.1} parent=11 // pred_check
        %p293 = pneg %p210
      $region42: #{basic_block_forward.1} parent=11 // pred_check_branch
        %295 = sbr.rel (%p293) target = $region44
      $region43: #{basic_block_forward.1} parent=11 // pred_region
        _
      $region44: #{basic_block_forward.1} parent=11 // pred_fallthru
        _
      // Predicated region
      $region45: #{basic_block_forward.1} parent=11 // pred_check
        %p296 = pneg %p231
      $region46: #{basic_block_forward.1} parent=11 // pred_check_branch
        %298 = sbr.rel (%p296) target = $region48
      $region47: #{basic_block_forward.1} parent=11 // pred_region
        _
      $region48: #{basic_block_forward.1} parent=11 // pred_fallthru
        _
    $region12: #{basic_block_forward.1} parent=5 // pred_fallthru
      _
    %p299 = scmp.lt.s32.totalorder %s16, 2
    // Predicated region
    $region49: #{basic_block_forward.1} parent=5 // pred_check
      %p300 = pneg %p299
    $region50: #{basic_block_forward.1} parent=5 // pred_check_branch
      %302 = sbr.rel (%p300) target = $region52
    $region51: #{basic_block_forward.1} parent=5 // pred_region
      // Predicated region
      $region53: #{basic_block_forward.1} parent=51 // pred_check
        %p303 = pneg %p36
      $region54: #{basic_block_forward.1} parent=51 // pred_check_branch
        %305 = sbr.rel (%p303) target = $region56
      $region55: #{basic_block_forward.1} parent=51 // pred_region
        %p306 = scmp.lt.s32.totalorder %s16, 1
        %s307 = scalar_select %p306, %s16, 1
        %s308 = smul.addr %s307, 36
        %s309 = smul.addr %s308, 4
        %s310 = scalar_lea.vmem %s0, %s309
      $region56: #{basic_block_forward.1} parent=51 // pred_fallthru
        _
    $region52: #{basic_block_forward.1} parent=5 // pred_fallthru
      _
    %p311 = scmp.le.s32.totalorder 1, %s16
    %p312 = scmp.lt.s32.totalorder %s16, 3
    %p313 = pnand %p311, %p312
    %p314 = pneg %p313
    // Predicated region
    $region57: #{basic_block_forward.1} parent=5 // pred_check
      _
    $region58: #{basic_block_forward.1} parent=5 // pred_check_branch
      %316 = sbr.rel (%p313) target = $region60
    $region59: #{basic_block_forward.1} parent=5 // pred_region
      %s317 = ssub.s32 %s16, 1
      %p318 = scmp.lt.s32.totalorder %s21, 1
      %s319 = scalar_select %p318, %s21, 1
      %s320 = smul.addr %s319, 36
      %s321 = smul.addr %s320, 4
      %s322 = scalar_lea.vmem %s0, %s321
      %p323 = pneg %p42
      %p324 = pneg %p39
      %p325 = pneg %p63
      %p326 = pneg %p60
      %p327 = pneg %p84
      %p328 = pneg %p81
      %p329 = pneg %p105
      %p330 = pneg %p102
      %p331 = pneg %p126
      %p332 = pneg %p123
      %p333 = pneg %p147
      %p334 = pneg %p144
      %p335 = pneg %p168
      %p336 = pneg %p165
      %p337 = pneg %p189
      %p338 = pneg %p186
      %p339 = pneg %p210
      %p340 = pneg %p207
      %p341 = pneg %p231
      %p342 = pneg %p228
      %p343 = pneg %p257
      %p344 = pneg %p254
      %p345 = scmp.lt.s32.totalorder %s21, 1
      %s346 = scalar_select %p345, %s21, 1
      %s347 = smul.addr %s346, 8
      %s348 = smul.addr %s347, 4
      %s349 = scalar_lea.vmem %s10, %s348
      %p350 = scmp.lt.s32.totalorder %s21, 1
      %s351 = scalar_select %p350, %s21, 1
      %s352 = smul.addr %s351, 36
      %s353 = smul.addr %s352, 4
      %s354 = scalar_lea.vmem %s0, %s353
      %p355 = scmp.lt.s32.totalorder %s21, 1
      %s356 = scalar_select %p355, %s21, 1
      %s357 = smul.addr %s356, 8
      %s358 = smul.addr %s357, 4
      %s359 = scalar_lea.vmem %s10, %s358
      %v361 = vld [vmem:[%s354] sm:$0xf]
      %v362 = vld [vmem:[%s354 + $0x4] sm:$0x1]
      %v363 = vld [vmem:[%s354 + $0x8] sm:$0xf]
      %v364 = vld [vmem:[%s354 + $0xc] sm:$0x1]
      %v365 = vld [vmem:[%s354 + $0x10] sm:$0xf]
      %v366 = vld [vmem:[%s354 + $0x14] sm:$0x1]
      %v367 = vld [vmem:[%s354 + $0x18] sm:$0xf]
      %v368 = vld [vmem:[%s354 + $0x1c] sm:$0x1]
      %v369 = vld [vmem:[%s354 + $0x20] sm:$0xf]
      %v370 = vld [vmem:[%s354 + $0x24] sm:$0x1]
      %v371 = vld [vmem:[%s354 + $0x28] sm:$0xf]
      %v372 = vld [vmem:[%s354 + $0x2c] sm:$0x1]
      %v373 = vld [vmem:[%s354 + $0x30] sm:$0xf]
      %v374 = vld [vmem:[%s354 + $0x34] sm:$0x1]
      %v375 = vld [vmem:[%s354 + $0x38] sm:$0xf]
      %v376 = vld [vmem:[%s354 + $0x3c] sm:$0x1]
      %v377 = vld [vmem:[%s354 + $0x40] sm:$0xf]
      %v378 = vld [vmem:[%s354 + $0x44] sm:$0x1]
      %v379 = vld [vmem:[%s354 + $0x48] sm:$0xf]
      %v380 = vld [vmem:[%s354 + $0x4c] sm:$0x1]
      %v381 = vld [vmem:[%s354 + $0x50] sm:$0xf]
      %v382 = vld [vmem:[%s354 + $0x54] sm:$0x1]
      %v383 = vld [vmem:[%s354 + $0x58] sm:$0xf]
      %v384 = vld [vmem:[%s354 + $0x5c] sm:$0x1]
      %v385 = vld [vmem:[%s354 + $0x60] sm:$0xf]
      %v386 = vld [vmem:[%s354 + $0x64] sm:$0x1]
      %v387 = vld [vmem:[%s354 + $0x68] sm:$0xf]
      %v388 = vld [vmem:[%s354 + $0x6c] sm:$0x1]
      %v389 = vld [vmem:[%s354 + $0x70] sm:$0xf]
      %v390 = vld [vmem:[%s354 + $0x74] sm:$0x1]
      %v391 = vld [vmem:[%s354 + $0x78] sm:$0xf]
      %v392 = vld [vmem:[%s354 + $0x7c] sm:$0x1]
      %v393 = vld [vmem:[%s354 + $0x80] sm:$0xf]
      %v394 = vld [vmem:[%s354 + $0x84] sm:$0x1]
      %v411 = vunpack.c.l.b16 %v361
      %v412 = vunpack.c.l.b16 %v362
      %v413 = vunpack.c.l.b16 %v365
      %v414 = vunpack.c.l.b16 %v366
      %v415 = vunpack.c.l.b16 %v369
      %v416 = vunpack.c.l.b16 %v370
      %v417 = vunpack.c.l.b16 %v373
      %v418 = vunpack.c.l.b16 %v374
      %v419 = vunpack.c.l.b16 %v377
      %v420 = vunpack.c.l.b16 %v378
      %v421 = vunpack.c.l.b16 %v381
      %v422 = vunpack.c.l.b16 %v382
      %v423 = vunpack.c.l.b16 %v385
      %v424 = vunpack.c.l.b16 %v386
      %v425 = vunpack.c.l.b16 %v389
      %v426 = vunpack.c.l.b16 %v390
      %v427 = vpack.c.b16 %v412, %v411
      %v428 = vpack.c.b16 %v414, %v413
      %v429 = vpack.c.b16 %v416, %v415
      %v430 = vpack.c.b16 %v418, %v417
      %v431 = vpack.c.b16 %v420, %v419
      %v432 = vpack.c.b16 %v422, %v421
      %v433 = vpack.c.b16 %v424, %v423
      %v434 = vpack.c.b16 %v426, %v425
      %v436 = vshrl.u32 %v427, 16
      %v438 = vshll.u32 %v427, 16
      %v440 = vrot.slane %v438, 1
      %v441 = vor.u32 %v436, %v440
      %v443 = vshrl.u32 %v428, 16
      %v445 = vshll.u32 %v428, 16
      %v447 = vrot.slane %v445, 1
      %v448 = vor.u32 %v443, %v447
      %v450 = vshrl.u32 %v429, 16
      %v452 = vshll.u32 %v429, 16
      %v454 = vrot.slane %v452, 1
      %v455 = vor.u32 %v450, %v454
      %v457 = vshrl.u32 %v430, 16
      %v459 = vshll.u32 %v430, 16
      %v461 = vrot.slane %v459, 1
      %v462 = vor.u32 %v457, %v461
      %v464 = vshrl.u32 %v431, 16
      %v466 = vshll.u32 %v431, 16
      %v468 = vrot.slane %v466, 1
      %v469 = vor.u32 %v464, %v468
      %v471 = vshrl.u32 %v432, 16
      %v473 = vshll.u32 %v432, 16
      %v475 = vrot.slane %v473, 1
      %v476 = vor.u32 %v471, %v475
      %v478 = vshrl.u32 %v433, 16
      %v480 = vshll.u32 %v433, 16
      %v482 = vrot.slane %v480, 1
      %v483 = vor.u32 %v478, %v482
      %v485 = vshrl.u32 %v434, 16
      %v487 = vshll.u32 %v434, 16
      %v489 = vrot.slane %v487, 1
      %v490 = vor.u32 %v485, %v489
      %491 = vrot.lane.b32.xlu0 %v441, 8
      %v492 = vpop.permute.xlu0 %491
      %493 = vrot.lane.b32.xlu0 %v448, 8
      %v494 = vpop.permute.xlu0 %493
      %495 = vrot.lane.b32.xlu0 %v455, 8
      %v496 = vpop.permute.xlu0 %495
      %497 = vrot.lane.b32.xlu0 %v462, 8
      %v498 = vpop.permute.xlu0 %497
      %499 = vrot.lane.b32.xlu0 %v469, 8
      %v500 = vpop.permute.xlu0 %499
      %501 = vrot.lane.b32.xlu0 %v476, 8
      %v502 = vpop.permute.xlu0 %501
      %503 = vrot.lane.b32.xlu0 %v483, 8
      %v504 = vpop.permute.xlu0 %503
      %505 = vrot.lane.b32.xlu0 %v490, 8
      %v506 = vpop.permute.xlu0 %505
      %vm507 = vcmask 64512
      %v510 = vsel %vm507, %v361, %v492
      %v513 = vsel %vm507, %v365, %v494
      %v516 = vsel %vm507, %v369, %v496
      %v519 = vsel %vm507, %v373, %v498
      %v522 = vsel %vm507, %v377, %v500
      %v525 = vsel %vm507, %v381, %v502
      %v528 = vsel %vm507, %v385, %v504
      %v531 = vsel %vm507, %v389, %v506
      %v532 = vld [vmem:[%s1] sm:$0xf]
      %v533 = vld [vmem:[%s1 + $0x4] sm:$0xf]
      %v550 = vunpack.c.l.b16 %v363
      %v551 = vunpack.c.l.b16 %v364
      %v552 = vunpack.c.l.b16 %v367
      %v553 = vunpack.c.l.b16 %v368
      %v554 = vunpack.c.l.b16 %v371
      %v555 = vunpack.c.l.b16 %v372
      %v556 = vunpack.c.l.b16 %v375
      %v557 = vunpack.c.l.b16 %v376
      %v558 = vunpack.c.l.b16 %v379
      %v559 = vunpack.c.l.b16 %v380
      %v560 = vunpack.c.l.b16 %v383
      %v561 = vunpack.c.l.b16 %v384
      %v562 = vunpack.c.l.b16 %v387
      %v563 = vunpack.c.l.b16 %v388
      %v564 = vunpack.c.l.b16 %v391
      %v565 = vunpack.c.l.b16 %v392
      %v566 = vpack.c.b16 %v551, %v550
      %v567 = vpack.c.b16 %v553, %v552
      %v568 = vpack.c.b16 %v555, %v554
      %v569 = vpack.c.b16 %v557, %v556
      %v570 = vpack.c.b16 %v559, %v558
      %v571 = vpack.c.b16 %v561, %v560
      %v572 = vpack.c.b16 %v563, %v562
      %v573 = vpack.c.b16 %v565, %v564
      %v575 = vshrl.u32 %v566, 16
      %v577 = vshll.u32 %v566, 16
      %v579 = vrot.slane %v577, 1
      %v580 = vor.u32 %v575, %v579
      %v582 = vshrl.u32 %v567, 16
      %v584 = vshll.u32 %v567, 16
      %v586 = vrot.slane %v584, 1
      %v587 = vor.u32 %v582, %v586
      %v589 = vshrl.u32 %v568, 16
      %v591 = vshll.u32 %v568, 16
      %v593 = vrot.slane %v591, 1
      %v594 = vor.u32 %v589, %v593
      %v596 = vshrl.u32 %v569, 16
      %v598 = vshll.u32 %v569, 16
      %v600 = vrot.slane %v598, 1
      %v601 = vor.u32 %v596, %v600
      %v603 = vshrl.u32 %v570, 16
      %v605 = vshll.u32 %v570, 16
      %v607 = vrot.slane %v605, 1
      %v608 = vor.u32 %v603, %v607
      %v610 = vshrl.u32 %v571, 16
      %v612 = vshll.u32 %v571, 16
      %v614 = vrot.slane %v612, 1
      %v615 = vor.u32 %v610, %v614
      %v617 = vshrl.u32 %v572, 16
      %v619 = vshll.u32 %v572, 16
      %v621 = vrot.slane %v619, 1
      %v622 = vor.u32 %v617, %v621
      %v624 = vshrl.u32 %v573, 16
      %v626 = vshll.u32 %v573, 16
      %v628 = vrot.slane %v626, 1
      %v629 = vor.u32 %v624, %v628
      %630 = vrot.lane.b32.xlu0 %v580, 8
      %v631 = vpop.permute.xlu0 %630
      %632 = vrot.lane.b32.xlu0 %v587, 8
      %v633 = vpop.permute.xlu0 %632
      %634 = vrot.lane.b32.xlu0 %v594, 8
      %v635 = vpop.permute.xlu0 %634
      %636 = vrot.lane.b32.xlu0 %v601, 8
      %v637 = vpop.permute.xlu0 %636
      %638 = vrot.lane.b32.xlu0 %v608, 8
      %v639 = vpop.permute.xlu0 %638
      %640 = vrot.lane.b32.xlu0 %v615, 8
      %v641 = vpop.permute.xlu0 %640
      %642 = vrot.lane.b32.xlu0 %v622, 8
      %v643 = vpop.permute.xlu0 %642
      %644 = vrot.lane.b32.xlu0 %v629, 8
      %v645 = vpop.permute.xlu0 %644
      %v648 = vsel %vm507, %v363, %v631
      %v651 = vsel %vm507, %v367, %v633
      %v654 = vsel %vm507, %v371, %v635
      %v657 = vsel %vm507, %v375, %v637
      %v660 = vsel %vm507, %v379, %v639
      %v663 = vsel %vm507, %v383, %v641
      %v666 = vsel %vm507, %v387, %v643
      %v669 = vsel %vm507, %v391, %v645
      %s670 = scalar_lea.vmem %s1, 8
      %v671 = vld [vmem:[%s670] sm:$0xf]
      %v672 = vld [vmem:[%s670 + $0x4] sm:$0xf]
      %v681 = vunpack.c.l.b16 %v648
      %v682 = vunpack.c.l.b16 %v651
      %v683 = vunpack.c.l.b16 %v654
      %v684 = vunpack.c.l.b16 %v657
      %v685 = vunpack.c.l.b16 %v660
      %v686 = vunpack.c.l.b16 %v663
      %v687 = vunpack.c.l.b16 %v666
      %v688 = vunpack.c.l.b16 %v669
      %v689 = vpack.c.b16 %v682, %v681
      %v690 = vpack.c.b16 %v684, %v683
      %v691 = vpack.c.b16 %v686, %v685
      %v692 = vpack.c.b16 %v688, %v687
      %v695 = vunpack.c.l.b16 %v671
      %v696 = vunpack.c.l.b16 %v672
      %v697 = vpack.c.b16 %v696, %v695
      %vm699 = vcmask 130048
      %v701 = vsel %vm699, %v689, 0
      %v704 = vsel %vm699, %v690, 0
      %v707 = vsel %vm699, %v691, 0
      %v710 = vsel %vm699, %v692, 0
      %712 = vmatprep.subr.bf16.mxu0 0
      %713 = vmatpush1.bf16.msra.mxu0 %v697
      %714 = vmatprep.subr.bf16.mxu0 0
      %715 = vmatpush1.bf16.msra.mxu0 0
      %716 = vmatprep.subr.bf16.mxu0 0
      %717 = vmatpush1.bf16.msra.mxu0 0
      %718 = vmatprep.subr.bf16.mxu0 0
      %719 = vmatpush1.bf16.msra.mxu0 0
      %720 = vmatprep.subr.bf16.mxu0 0
      %721 = vmatpush1.bf16.msra.mxu0 0
      %722 = vmatprep.subr.bf16.mxu0 0
      %723 = vmatpush1.bf16.msra.mxu0 0
      %724 = vmatprep.subr.bf16.mxu0 0
      %725 = vmatpush1.bf16.msra.mxu0 0
      %726 = vmatprep.subr.bf16.mxu0 0
      %727 = vmatpush1.bf16.msra.mxu0 0
      %728 = vmatprep.subr.bf16.mxu0 0
      %729 = vmatpush1.bf16.msra.mxu0 0
      %730 = vmatprep.subr.bf16.mxu0 0
      %731 = vmatpush1.bf16.msra.mxu0 0
      %732 = vmatprep.subr.bf16.mxu0 0
      %733 = vmatpush1.bf16.msra.mxu0 0
      %734 = vmatprep.subr.bf16.mxu0 0
      %735 = vmatpush1.bf16.msra.mxu0 0
      %736 = vmatprep.subr.bf16.mxu0 0
      %737 = vmatpush1.bf16.msra.mxu0 0
      %738 = vmatprep.subr.bf16.mxu0 0
      %739 = vmatpush1.bf16.msra.mxu0 0
      %740 = vmatprep.subr.bf16.mxu0 0
      %741 = vmatpush1.bf16.msra.mxu0 0
      %742 = vmatprep.subr.bf16.mxu0 0
      %743 = vmatpush1.bf16.msra.mxu0 0
      %744 = vmatprep.mubr.bf16.mxu0 0
      %745 = vmatmul.mubr.bf16.gmra.mrb[0].mxu0 %v701
      %v746 = vpop.f32.mrb[0].mxu0
      %v747 = vadd.f32 0.0, %v746
      %v748 = vpop.f32.mrb[0].mxu0
      %v749 = vpop.f32.mrb[0].mxu0
      %v750 = vadd.f32 0.0, %v749
      %v751 = vpop.f32.mrb[0].mxu0
      %752 = vmatprep.mubr.bf16.mxu0 0
      %753 = vmatmul.mubr.bf16.gmra.mrb[0].mxu0 %v704
      %v754 = vpop.f32.mrb[0].mxu0
      %v755 = vadd.f32 0.0, %v754
      %v756 = vpop.f32.mrb[0].mxu0
      %v757 = vpop.f32.mrb[0].mxu0
      %v758 = vadd.f32 0.0, %v757
      %v759 = vpop.f32.mrb[0].mxu0
      %760 = vmatprep.mubr.bf16.mxu0 0
      %761 = vmatmul.mubr.bf16.gmra.mrb[0].mxu0 %v707
      %v762 = vpop.f32.mrb[0].mxu0
      %v763 = vadd.f32 0.0, %v762
      %v764 = vpop.f32.mrb[0].mxu0
      %v765 = vpop.f32.mrb[0].mxu0
      %v766 = vadd.f32 0.0, %v765
      %v767 = vpop.f32.mrb[0].mxu0
      %768 = vmatprep.mubr.bf16.mxu0 0
      %769 = vmatmul.mubr.bf16.gmra.mrb[0].mxu0 %v710
      %v770 = vpop.f32.mrb[0].mxu0
      %v771 = vadd.f32 0.0, %v770
      %v772 = vpop.f32.mrb[0].mxu0
      %v773 = vpop.f32.mrb[0].mxu0
      %v774 = vadd.f32 0.0, %v773
      %v775 = vpop.f32.mrb[0].mxu0
      %776 = vdwg.mxu0
      %v785 = vunpack.c.l.b16 %v510
      %v786 = vunpack.c.l.b16 %v513
      %v787 = vunpack.c.l.b16 %v516
      %v788 = vunpack.c.l.b16 %v519
      %v789 = vunpack.c.l.b16 %v522
      %v790 = vunpack.c.l.b16 %v525
      %v791 = vunpack.c.l.b16 %v528
      %v792 = vunpack.c.l.b16 %v531
      %v793 = vpack.c.b16 %v786, %v785
      %v794 = vpack.c.b16 %v788, %v787
      %v795 = vpack.c.b16 %v790, %v789
      %v796 = vpack.c.b16 %v792, %v791
      %v799 = vunpack.c.l.b16 %v532
      %v800 = vunpack.c.l.b16 %v533
      %v801 = vpack.c.b16 %v800, %v799
      %v804 = vsel %vm699, %v793, 0
      %v807 = vsel %vm699, %v794, 0
      %v810 = vsel %vm699, %v795, 0
      %v813 = vsel %vm699, %v796, 0
      %815 = vmatprep.subr.bf16.mxu0 0
      %816 = vmatpush1.bf16.msra.mxu0 %v801
      %817 = vmatprep.subr.bf16.mxu0 0
      %818 = vmatpush1.bf16.msra.mxu0 0
      %819 = vmatprep.subr.bf16.mxu0 0
      %820 = vmatpush1.bf16.msra.mxu0 0
      %821 = vmatprep.subr.bf16.mxu0 0
      %822 = vmatpush1.bf16.msra.mxu0 0
      %823 = vmatprep.subr.bf16.mxu0 0
      %824 = vmatpush1.bf16.msra.mxu0 0
      %825 = vmatprep.subr.bf16.mxu0 0
      %826 = vmatpush1.bf16.msra.mxu0 0
      %827 = vmatprep.subr.bf16.mxu0 0
      %828 = vmatpush1.bf16.msra.mxu0 0
      %829 = vmatprep.subr.bf16.mxu0 0
      %830 = vmatpush1.bf16.msra.mxu0 0
      %831 = vmatprep.subr.bf16.mxu0 0
      %832 = vmatpush1.bf16.msra.mxu0 0
      %833 = vmatprep.subr.bf16.mxu0 0
      %834 = vmatpush1.bf16.msra.mxu0 0
      %835 = vmatprep.subr.bf16.mxu0 0
      %836 = vmatpush1.bf16.msra.mxu0 0
      %837 = vmatprep.subr.bf16.mxu0 0
      %838 = vmatpush1.bf16.msra.mxu0 0
      %839 = vmatprep.subr.bf16.mxu0 0
      %840 = vmatpush1.bf16.msra.mxu0 0
      %841 = vmatprep.subr.bf16.mxu0 0
      %842 = vmatpush1.bf16.msra.mxu0 0
      %843 = vmatprep.subr.bf16.mxu0 0
      %844 = vmatpush1.bf16.msra.mxu0 0
      %845 = vmatprep.subr.bf16.mxu0 0
      %846 = vmatpush1.bf16.msra.mxu0 0
      %847 = vmatprep.mubr.bf16.mxu0 0
      %848 = vmatmul.mubr.bf16.gmra.mrb[0].mxu0 %v804
      %v849 = vpop.f32.mrb[0].mxu0
      %v850 = vadd.f32 %v747, %v849
      %v851 = vpop.f32.mrb[0].mxu0
      %v852 = vpop.f32.mrb[0].mxu0
      %v853 = vadd.f32 %v750, %v852
      %v854 = vpop.f32.mrb[0].mxu0
      %855 = vmatprep.mubr.bf16.mxu0 0
      %856 = vmatmul.mubr.bf16.gmra.mrb[0].mxu0 %v807
      %v857 = vpop.f32.mrb[0].mxu0
      %v858 = vadd.f32 %v755, %v857
      %v859 = vpop.f32.mrb[0].mxu0
      %v860 = vpop.f32.mrb[0].mxu0
      %v861 = vadd.f32 %v758, %v860
      %v862 = vpop.f32.mrb[0].mxu0
      %863 = vmatprep.mubr.bf16.mxu0 0
      %864 = vmatmul.mubr.bf16.gmra.mrb[0].mxu0 %v810
      %v865 = vpop.f32.mrb[0].mxu0
      %v866 = vadd.f32 %v763, %v865
      %v867 = vpop.f32.mrb[0].mxu0
      %v868 = vpop.f32.mrb[0].mxu0
      %v869 = vadd.f32 %v766, %v868
      %v870 = vpop.f32.mrb[0].mxu0
      %871 = vmatprep.mubr.bf16.mxu0 0
      %872 = vmatmul.mubr.bf16.gmra.mrb[0].mxu0 %v813
      %v873 = vpop.f32.mrb[0].mxu0
      %v874 = vadd.f32 %v771, %v873
      %v875 = vpop.f32.mrb[0].mxu0
      %v876 = vpop.f32.mrb[0].mxu0
      %v877 = vadd.f32 %v774, %v876
      %v878 = vpop.f32.mrb[0].mxu0
      %879 = vdwg.mxu0
      %v882 = vunpack.c.l.b16 %v393
      %v883 = vunpack.c.l.b16 %v394
      %v884 = vpack.c.b16 %v883, %v882
      %v886 = vshrl.u32 %v884, 16
      %v888 = vshll.u32 %v884, 16
      %v890 = vrot.slane %v888, 1
      %v891 = vor.u32 %v886, %v890
      %892 = vrot.lane.b32.xlu0 %v891, 8
      %v893 = vpop.permute.xlu0 %892
      %v896 = vsel %vm507, %v393, %v893
      %s897 = scalar_lea.vmem %s1, 16
      %v898 = vld [vmem:[%s897] sm:$0xf]
      %v899 = vld [vmem:[%s897 + $0x4] sm:$0xf]
      %v901 = vunpack.c.l.b16 %v896
      %v902 = vpack.c.b16 %v787, %v786
      %v903 = vpack.c.b16 %v789, %v788
      %v904 = vpack.c.b16 %v791, %v790
      %v905 = vpack.c.b16 %v901, %v792
      %v908 = vunpack.c.l.b16 %v898
      %v909 = vunpack.c.l.b16 %v899
      %v910 = vpack.c.b16 %v909, %v908
      %v913 = vsel %vm699, %v902, 0
      %v916 = vsel %vm699, %v903, 0
      %v919 = vsel %vm699, %v904, 0
      %v922 = vsel %vm699, %v905, 0
      %924 = vmatprep.subr.bf16.mxu0 0
      %925 = vmatpush1.bf16.msra.mxu0 %v910
      %926 = vmatprep.subr.bf16.mxu0 0
      %927 = vmatpush1.bf16.msra.mxu0 0
      %928 = vmatprep.subr.bf16.mxu0 0
      %929 = vmatpush1.bf16.msra.mxu0 0
      %930 = vmatprep.subr.bf16.mxu0 0
      %931 = vmatpush1.bf16.msra.mxu0 0
      %932 = vmatprep.subr.bf16.mxu0 0
      %933 = vmatpush1.bf16.msra.mxu0 0
      %934 = vmatprep.subr.bf16.mxu0 0
      %935 = vmatpush1.bf16.msra.mxu0 0
      %936 = vmatprep.subr.bf16.mxu0 0
      %937 = vmatpush1.bf16.msra.mxu0 0
      %938 = vmatprep.subr.bf16.mxu0 0
      %939 = vmatpush1.bf16.msra.mxu0 0
      %940 = vmatprep.subr.bf16.mxu0 0
      %941 = vmatpush1.bf16.msra.mxu0 0
      %942 = vmatprep.subr.bf16.mxu0 0
      %943 = vmatpush1.bf16.msra.mxu0 0
      %944 = vmatprep.subr.bf16.mxu0 0
      %945 = vmatpush1.bf16.msra.mxu0 0
      %946 = vmatprep.subr.bf16.mxu0 0
      %947 = vmatpush1.bf16.msra.mxu0 0
      %948 = vmatprep.subr.bf16.mxu0 0
      %949 = vmatpush1.bf16.msra.mxu0 0
      %950 = vmatprep.subr.bf16.mxu0 0
      %951 = vmatpush1.bf16.msra.mxu0 0
      %952 = vmatprep.subr.bf16.mxu0 0
      %953 = vmatpush1.bf16.msra.mxu0 0
      %954 = vmatprep.subr.bf16.mxu0 0
      %955 = vmatpush1.bf16.msra.mxu0 0
      %956 = vmatprep.mubr.bf16.mxu0 0
      %957 = vmatmul.mubr.bf16.gmra.mrb[0].mxu0 %v913
      %v958 = vpop.f32.mrb[0].mxu0
      %v959 = vadd.f32 0.0, %v958
      %v960 = vpop.f32.mrb[0].mxu0
      %v961 = vpop.f32.mrb[0].mxu0
      %v962 = vadd.f32 0.0, %v961
      %v963 = vpop.f32.mrb[0].mxu0
      %964 = vmatprep.mubr.bf16.mxu0 0
      %965 = vmatmul.mubr.bf16.gmra.mrb[0].mxu0 %v916
      %v966 = vpop.f32.mrb[0].mxu0
      %v967 = vadd.f32 0.0, %v966
      %v968 = vpop.f32.mrb[0].mxu0
      %v969 = vpop.f32.mrb[0].mxu0
      %v970 = vadd.f32 0.0, %v969
      %v971 = vpop.f32.mrb[0].mxu0
      %972 = vmatprep.mubr.bf16.mxu0 0
      %973 = vmatmul.mubr.bf16.gmra.mrb[0].mxu0 %v919
      %v974 = vpop.f32.mrb[0].mxu0
      %v975 = vadd.f32 0.0, %v974
      %v976 = vpop.f32.mrb[0].mxu0
      %v977 = vpop.f32.mrb[0].mxu0
      %v978 = vadd.f32 0.0, %v977
      %v979 = vpop.f32.mrb[0].mxu0
      %980 = vmatprep.mubr.bf16.mxu0 0
      %981 = vmatmul.mubr.bf16.gmra.mrb[0].mxu0 %v922
      %v982 = vpop.f32.mrb[0].mxu0
      %v983 = vadd.f32 0.0, %v982
      %v984 = vpop.f32.mrb[0].mxu0
      %v985 = vpop.f32.mrb[0].mxu0
      %v986 = vadd.f32 0.0, %v985
      %v987 = vpop.f32.mrb[0].mxu0
      %988 = vdwg.mxu0
      %v989 = vadd.f32 %v850, %v959
      %v990 = vadd.f32 %v853, %v962
      %v991 = vadd.f32 %v858, %v967
      %v992 = vadd.f32 %v861, %v970
      %v993 = vadd.f32 %v866, %v975
      %v994 = vadd.f32 %v869, %v978
      %v995 = vadd.f32 %v874, %v983
      %v996 = vadd.f32 %v877, %v986
      %v997 = vld [vmem:[%s2] sm:$0x1]
      %v999 = vlaneseq
      %v1000 = vshrl.u32 %v999, 7
      %v1001 = vsub.s32 0, %v1000
      %v1002 = vrot.slane %v997, %v1001
      %v1004 = vmul.f32 %v989, %v1002
      %v1005 = vmul.f32 %v990, %v1002
      %v1006 = vmul.f32 %v991, %v1002
      %v1007 = vmul.f32 %v992, %v1002
      %v1008 = vmul.f32 %v993, %v1002
      %v1009 = vmul.f32 %v994, %v1002
      %v1010 = vmul.f32 %v995, %v1002
      %v1011 = vmul.f32 %v996, %v1002
      %v1012 = vld [vmem:[%s3] sm:$0x1]
      %v1014 = vlaneseq
      %v1015 = vshrl.u32 %v1014, 7
      %v1016 = vsub.s32 0, %v1015
      %v1017 = vrot.slane %v1012, %v1016
      %v1019 = vadd.f32 %v1004, %v1017
      %v1020 = vadd.f32 %v1005, %v1017
      %v1021 = vadd.f32 %v1006, %v1017
      %v1022 = vadd.f32 %v1007, %v1017
      %v1023 = vadd.f32 %v1008, %v1017
      %v1024 = vadd.f32 %v1009, %v1017
      %v1025 = vadd.f32 %v1010, %v1017
      %v1026 = vadd.f32 %v1011, %v1017
      %v1027 = vmax.f32 %v1019, 0.0
      %v1028 = vmax.f32 %v1020, 0.0
      %v1029 = vmax.f32 %v1021, 0.0
      %v1030 = vmax.f32 %v1022, 0.0
      %v1031 = vmax.f32 %v1023, 0.0
      %v1032 = vmax.f32 %v1024, 0.0
      %v1033 = vmax.f32 %v1025, 0.0
      %v1034 = vmax.f32 %v1026, 0.0
      %v1035 = vpack.c.bf16 %v1027, %v1027
      %v1036 = vpack.c.bf16 %v1028, %v1028
      %v1037 = vpack.c.bf16 %v1029, %v1029
      %v1038 = vpack.c.bf16 %v1030, %v1030
      %v1039 = vpack.c.bf16 %v1031, %v1031
      %v1040 = vpack.c.bf16 %v1032, %v1032
      %v1041 = vpack.c.bf16 %v1033, %v1033
      %v1042 = vpack.c.bf16 %v1034, %v1034
      %v1044 = vshrl.u32 %v1035, 16
      %v1046 = vrot.slane %v1044, 7
      %v1047 = vshll.u32 %v1035, 16
      %v1049 = vor.u32 %v1046, %v1047
      %v1051 = vshrl.u32 %v1036, 16
      %v1053 = vrot.slane %v1051, 7
      %v1054 = vshll.u32 %v1036, 16
      %v1056 = vor.u32 %v1053, %v1054
      %v1058 = vshrl.u32 %v1037, 16
      %v1060 = vrot.slane %v1058, 7
      %v1061 = vshll.u32 %v1037, 16
      %v1063 = vor.u32 %v1060, %v1061
      %v1065 = vshrl.u32 %v1038, 16
      %v1067 = vrot.slane %v1065, 7
      %v1068 = vshll.u32 %v1038, 16
      %v1070 = vor.u32 %v1067, %v1068
      %v1072 = vshrl.u32 %v1039, 16
      %v1074 = vrot.slane %v1072, 7
      %v1075 = vshll.u32 %v1039, 16
      %v1077 = vor.u32 %v1074, %v1075
      %v1079 = vshrl.u32 %v1040, 16
      %v1081 = vrot.slane %v1079, 7
      %v1082 = vshll.u32 %v1040, 16
      %v1084 = vor.u32 %v1081, %v1082
      %v1086 = vshrl.u32 %v1041, 16
      %v1088 = vrot.slane %v1086, 7
      %v1089 = vshll.u32 %v1041, 16
      %v1091 = vor.u32 %v1088, %v1089
      %v1093 = vshrl.u32 %v1042, 16
      %v1095 = vrot.slane %v1093, 7
      %v1096 = vshll.u32 %v1042, 16
      %v1098 = vor.u32 %v1095, %v1096
      %vm1107 = vcmask 1040384
      %vm1108 = vsmask.f32 256
      %vm1109 = vmand %vm1107, %vm1108
      %v1110 = vsel %vm1109, 0, %v1049
      %v1111 = vsel %vm1109, 0, %v1056
      %v1112 = vsel %vm1109, 0, %v1063
      %v1113 = vsel %vm1109, 0, %v1070
      %v1114 = vsel %vm1109, 0, %v1077
      %v1115 = vsel %vm1109, 0, %v1084
      %v1116 = vsel %vm1109, 0, %v1091
      %v1117 = vsel %vm1109, 0, %v1098
      %vm1118 = vcmask 1044480
      %vm1119 = vsmask.f32 4352
      %vm1120 = vmand %vm1118, %vm1119
      %v1121 = vsel %vm1120, %v1110, 0
      %v1122 = vsel %vm1120, %v1111, 0
      %v1123 = vsel %vm1120, %v1112, 0
      %v1124 = vsel %vm1120, %v1113, 0
      %v1125 = vsel %vm1120, %v1114, 0
      %v1126 = vsel %vm1120, %v1115, 0
      %v1127 = vsel %vm1120, %v1116, 0
      %v1128 = vsel %vm1120, %v1117, 0
      %v1138 = vunpack.c.l.b16 0
      %v1139 = vunpack.c.h.b16 0
      %v1140 = vunpack.c.l.b16 %v1121
      %v1141 = vunpack.c.h.b16 %v1121
      %v1142 = vunpack.c.l.b16 %v1122
      %v1143 = vunpack.c.h.b16 %v1122
      %v1144 = vunpack.c.l.b16 %v1123
      %v1145 = vunpack.c.h.b16 %v1123
      %v1146 = vunpack.c.l.b16 %v1124
      %v1147 = vunpack.c.h.b16 %v1124
      %v1148 = vunpack.c.l.b16 %v1125
      %v1149 = vunpack.c.h.b16 %v1125
      %v1150 = vunpack.c.l.b16 %v1126
      %v1151 = vunpack.c.h.b16 %v1126
      %v1152 = vunpack.c.l.b16 %v1127
      %v1153 = vunpack.c.h.b16 %v1127
      %v1154 = vunpack.c.l.b16 %v1128
      %v1155 = vunpack.c.h.b16 %v1128
      %v1156 = vpack.c.b16 %v1138, %v1138
      %v1157 = vpack.c.b16 %v1139, %v1139
      %v1158 = vpack.c.b16 %v1140, %v1140
      %v1159 = vpack.c.b16 %v1141, %v1141
      %v1160 = vpack.c.b16 %v1142, %v1142
      %v1161 = vpack.c.b16 %v1143, %v1143
      %v1162 = vpack.c.b16 %v1144, %v1144
      %v1163 = vpack.c.b16 %v1145, %v1145
      %v1164 = vpack.c.b16 %v1146, %v1146
      %v1165 = vpack.c.b16 %v1147, %v1147
      %v1166 = vpack.c.b16 %v1148, %v1148
      %v1167 = vpack.c.b16 %v1149, %v1149
      %v1168 = vpack.c.b16 %v1150, %v1150
      %v1169 = vpack.c.b16 %v1151, %v1151
      %v1170 = vpack.c.b16 %v1152, %v1152
      %v1171 = vpack.c.b16 %v1153, %v1153
      %v1172 = vpack.c.b16 %v1154, %v1154
      %v1173 = vpack.c.b16 %v1155, %v1155
      %vm1192 = vcmask 60416
      %1193 = vst.msk [vmem:[#allocation2] sm:$0xf] %vm1192, %v1156
      %vm1194 = vcmask 57344
      %1195 = vst.msk [vmem:[#allocation2 + $0x4] sm:$0x1] %vm1194, %v1157
      %1196 = vst.msk [vmem:[#allocation2 + $0x8] sm:$0xf] %vm1192, %v1158
      %1197 = vst.msk [vmem:[#allocation2 + $0xc] sm:$0x1] %vm1194, %v1159
      %1198 = vst.msk [vmem:[#allocation2 + $0x10] sm:$0xf] %vm1192, %v1160
      %1199 = vst.msk [vmem:[#allocation2 + $0x14] sm:$0x1] %vm1194, %v1161
      %1200 = vst.msk [vmem:[#allocation2 + $0x18] sm:$0xf] %vm1192, %v1162
      %1201 = vst.msk [vmem:[#allocation2 + $0x1c] sm:$0x1] %vm1194, %v1163
      %1202 = vst.msk [vmem:[#allocation2 + $0x20] sm:$0xf] %vm1192, %v1164
      %1203 = vst.msk [vmem:[#allocation2 + $0x24] sm:$0x1] %vm1194, %v1165
      %1204 = vst.msk [vmem:[#allocation2 + $0x28] sm:$0xf] %vm1192, %v1166
      %1205 = vst.msk [vmem:[#allocation2 + $0x2c] sm:$0x1] %vm1194, %v1167
      %1206 = vst.msk [vmem:[#allocation2 + $0x30] sm:$0xf] %vm1192, %v1168
      %1207 = vst.msk [vmem:[#allocation2 + $0x34] sm:$0x1] %vm1194, %v1169
      %1208 = vst.msk [vmem:[#allocation2 + $0x38] sm:$0xf] %vm1192, %v1170
      %1209 = vst.msk [vmem:[#allocation2 + $0x3c] sm:$0x1] %vm1194, %v1171
      %1210 = vst.msk [vmem:[#allocation2 + $0x40] sm:$0xf] %vm1192, %v1172
      %1211 = vst.msk [vmem:[#allocation2 + $0x44] sm:$0x1] %vm1194, %v1173
      %1212 = vst.msk [vmem:[#allocation2 + $0x48] sm:$0xf] %vm1192, %v1156
      %1213 = vst.msk [vmem:[#allocation2 + $0x4c] sm:$0x1] %vm1194, %v1157
      %v1214 = vld [vmem:[%s7] sm:$0xf]
      %v1215 = vpack.c.b16 %v552, %v550
      %v1216 = vpack.c.b16 %v556, %v554
      %v1217 = vpack.c.b16 %v560, %v558
      %v1218 = vpack.c.b16 %v564, %v562
      %v1220 = vsel %vm507, %v1215, 0
      %v1223 = vsel %vm507, %v1216, 0
      %v1226 = vsel %vm507, %v1217, 0
      %v1229 = vsel %vm507, %v1218, 0
      %vm1231 = vcmask 1043456
      %v1233 = vsel %vm1231, %v1214, 0
      %1235 = vmatprep.subr.bf16.mxu0 0
      %1236 = vmatpush1.bf16.msra.mxu0 %v1233
      %1237 = vmatprep.subr.bf16.mxu0 0
      %1238 = vmatpush1.bf16.msra.mxu0 0
      %1239 = vmatprep.subr.bf16.mxu0 0
      %1240 = vmatpush1.bf16.msra.mxu0 0
      %1241 = vmatprep.subr.bf16.mxu0 0
      %1242 = vmatpush1.bf16.msra.mxu0 0
      %1243 = vmatprep.subr.bf16.mxu0 0
      %1244 = vmatpush1.bf16.msra.mxu0 0
      %1245 = vmatprep.subr.bf16.mxu0 0
      %1246 = vmatpush1.bf16.msra.mxu0 0
      %1247 = vmatprep.subr.bf16.mxu0 0
      %1248 = vmatpush1.bf16.msra.mxu0 0
      %1249 = vmatprep.subr.bf16.mxu0 0
      %1250 = vmatpush1.bf16.msra.mxu0 0
      %1251 = vmatprep.subr.bf16.mxu0 0
      %1252 = vmatpush1.bf16.msra.mxu0 0
      %1253 = vmatprep.subr.bf16.mxu0 0
      %1254 = vmatpush1.bf16.msra.mxu0 0
      %1255 = vmatprep.subr.bf16.mxu0 0
      %1256 = vmatpush1.bf16.msra.mxu0 0
      %1257 = vmatprep.subr.bf16.mxu0 0
      %1258 = vmatpush1.bf16.msra.mxu0 0
      %1259 = vmatprep.subr.bf16.mxu0 0
      %1260 = vmatpush1.bf16.msra.mxu0 0
      %1261 = vmatprep.subr.bf16.mxu0 0
      %1262 = vmatpush1.bf16.msra.mxu0 0
      %1263 = vmatprep.subr.bf16.mxu0 0
      %1264 = vmatpush1.bf16.msra.mxu0 0
      %1265 = vmatprep.subr.bf16.mxu0 0
      %1266 = vmatpush1.bf16.msra.mxu0 0
      %1267 = vmatprep.mubr.bf16.mxu0 0
      %1268 = vmatmul.mubr.bf16.gmra.mrb[0].mxu0 %v1220
      %v1269 = vpop.f32.mrb[0].mxu0
      %v1270 = vadd.f32 0.0, %v1269
      %v1271 = vpop.f32.mrb[0].mxu0
      %v1272 = vpop.f32.mrb[0].mxu0
      %v1273 = vadd.f32 0.0, %v1272
      %v1274 = vpop.f32.mrb[0].mxu0
      %1275 = vmatprep.mubr.bf16.mxu0 0
      %1276 = vmatmul.mubr.bf16.gmra.mrb[0].mxu0 %v1223
      %v1277 = vpop.f32.mrb[0].mxu0
      %v1278 = vadd.f32 0.0, %v1277
      %v1279 = vpop.f32.mrb[0].mxu0
      %v1280 = vpop.f32.mrb[0].mxu0
      %v1281 = vadd.f32 0.0, %v1280
      %v1282 = vpop.f32.mrb[0].mxu0
      %1283 = vmatprep.mubr.bf16.mxu0 0
      %1284 = vmatmul.mubr.bf16.gmra.mrb[0].mxu0 %v1226
      %v1285 = vpop.f32.mrb[0].mxu0
      %v1286 = vadd.f32 0.0, %v1285
      %v1287 = vpop.f32.mrb[0].mxu0
      %v1288 = vpop.f32.mrb[0].mxu0
      %v1289 = vadd.f32 0.0, %v1288
      %v1290 = vpop.f32.mrb[0].mxu0
      %1291 = vmatprep.mubr.bf16.mxu0 0
      %1292 = vmatmul.mubr.bf16.gmra.mrb[0].mxu0 %v1229
      %v1293 = vpop.f32.mrb[0].mxu0
      %v1294 = vadd.f32 0.0, %v1293
      %v1295 = vpop.f32.mrb[0].mxu0
      %v1296 = vpop.f32.mrb[0].mxu0
      %v1297 = vadd.f32 0.0, %v1296
      %v1298 = vpop.f32.mrb[0].mxu0
      %1299 = vdwg.mxu0
      %v1300 = vld [vmem:[%s8] sm:$0x1]
      %v1302 = vlaneseq
      %v1303 = vshrl.u32 %v1302, 7
      %v1304 = vsub.s32 0, %v1303
      %v1305 = vrot.slane %v1300, %v1304
      %v1307 = vmul.f32 %v1270, %v1305
      %v1308 = vmul.f32 %v1273, %v1305
      %v1309 = vmul.f32 %v1278, %v1305
      %v1310 = vmul.f32 %v1281, %v1305
      %v1311 = vmul.f32 %v1286, %v1305
      %v1312 = vmul.f32 %v1289, %v1305
      %v1313 = vmul.f32 %v1294, %v1305
      %v1314 = vmul.f32 %v1297, %v1305
      %v1315 = vld [vmem:[%s9] sm:$0x1]
      %v1317 = vlaneseq
      %v1318 = vshrl.u32 %v1317, 7
      %v1319 = vsub.s32 0, %v1318
      %v1320 = vrot.slane %v1315, %v1319
      %v1322 = vadd.f32 %v1307, %v1320
      %v1323 = vadd.f32 %v1308, %v1320
      %v1324 = vadd.f32 %v1309, %v1320
      %v1325 = vadd.f32 %v1310, %v1320
      %v1326 = vadd.f32 %v1311, %v1320
      %v1327 = vadd.f32 %v1312, %v1320
      %v1328 = vadd.f32 %v1313, %v1320
      %v1329 = vadd.f32 %v1314, %v1320
      %v1330 = vld [vmem:[#allocation2] sm:$0xf]
      %v1331 = vld [vmem:[#allocation2 + $0x4] sm:$0x1]
      %v1332 = vld [vmem:[#allocation2 + $0x8] sm:$0xf]
      %v1333 = vld [vmem:[#allocation2 + $0xc] sm:$0x1]
      %v1334 = vld [vmem:[#allocation2 + $0x10] sm:$0xf]
      %v1335 = vld [vmem:[#allocation2 + $0x14] sm:$0x1]
      %v1336 = vld [vmem:[#allocation2 + $0x18] sm:$0xf]
      %v1337 = vld [vmem:[#allocation2 + $0x1c] sm:$0x1]
      %v1338 = vld [vmem:[#allocation2 + $0x20] sm:$0xf]
      %v1339 = vld [vmem:[#allocation2 + $0x24] sm:$0x1]
      %v1340 = vld [vmem:[#allocation2 + $0x28] sm:$0xf]
      %v1341 = vld [vmem:[#allocation2 + $0x2c] sm:$0x1]
      %v1342 = vld [vmem:[#allocation2 + $0x30] sm:$0xf]
      %v1343 = vld [vmem:[#allocation2 + $0x34] sm:$0x1]
      %v1344 = vld [vmem:[#allocation2 + $0x38] sm:$0xf]
      %v1345 = vld [vmem:[#allocation2 + $0x3c] sm:$0x1]
      %v1362 = vunpack.c.l.b16 %v1330
      %v1363 = vunpack.c.l.b16 %v1331
      %v1364 = vunpack.c.l.b16 %v1332
      %v1365 = vunpack.c.l.b16 %v1333
      %v1366 = vunpack.c.l.b16 %v1334
      %v1367 = vunpack.c.l.b16 %v1335
      %v1368 = vunpack.c.l.b16 %v1336
      %v1369 = vunpack.c.l.b16 %v1337
      %v1370 = vunpack.c.l.b16 %v1338
      %v1371 = vunpack.c.l.b16 %v1339
      %v1372 = vunpack.c.l.b16 %v1340
      %v1373 = vunpack.c.l.b16 %v1341
      %v1374 = vunpack.c.l.b16 %v1342
      %v1375 = vunpack.c.l.b16 %v1343
      %v1376 = vunpack.c.l.b16 %v1344
      %v1377 = vunpack.c.l.b16 %v1345
      %v1378 = vpack.c.b16 %v1363, %v1362
      %v1379 = vpack.c.b16 %v1365, %v1364
      %v1380 = vpack.c.b16 %v1367, %v1366
      %v1381 = vpack.c.b16 %v1369, %v1368
      %v1382 = vpack.c.b16 %v1371, %v1370
      %v1383 = vpack.c.b16 %v1373, %v1372
      %v1384 = vpack.c.b16 %v1375, %v1374
      %v1385 = vpack.c.b16 %v1377, %v1376
      %v1387 = vshrl.u32 %v1378, 16
      %v1389 = vshll.u32 %v1378, 16
      %v1391 = vrot.slane %v1389, 1
      %v1392 = vor.u32 %v1387, %v1391
      %v1394 = vshrl.u32 %v1379, 16
      %v1396 = vshll.u32 %v1379, 16
      %v1398 = vrot.slane %v1396, 1
      %v1399 = vor.u32 %v1394, %v1398
      %v1401 = vshrl.u32 %v1380, 16
      %v1403 = vshll.u32 %v1380, 16
      %v1405 = vrot.slane %v1403, 1
      %v1406 = vor.u32 %v1401, %v1405
      %v1408 = vshrl.u32 %v1381, 16
      %v1410 = vshll.u32 %v1381, 16
      %v1412 = vrot.slane %v1410, 1
      %v1413 = vor.u32 %v1408, %v1412
      %v1415 = vshrl.u32 %v1382, 16
      %v1417 = vshll.u32 %v1382, 16
      %v1419 = vrot.slane %v1417, 1
      %v1420 = vor.u32 %v1415, %v1419
      %v1422 = vshrl.u32 %v1383, 16
      %v1424 = vshll.u32 %v1383, 16
      %v1426 = vrot.slane %v1424, 1
      %v1427 = vor.u32 %v1422, %v1426
      %v1429 = vshrl.u32 %v1384, 16
      %v1431 = vshll.u32 %v1384, 16
      %v1433 = vrot.slane %v1431, 1
      %v1434 = vor.u32 %v1429, %v1433
      %v1436 = vshrl.u32 %v1385, 16
      %v1438 = vshll.u32 %v1385, 16
      %v1440 = vrot.slane %v1438, 1
      %v1441 = vor.u32 %v1436, %v1440
      %1442 = vrot.lane.b32.xlu0 %v1392, 8
      %v1443 = vpop.permute.xlu0 %1442
      %1444 = vrot.lane.b32.xlu0 %v1399, 8
      %v1445 = vpop.permute.xlu0 %1444
      %1446 = vrot.lane.b32.xlu0 %v1406, 8
      %v1447 = vpop.permute.xlu0 %1446
      %1448 = vrot.lane.b32.xlu0 %v1413, 8
      %v1449 = vpop.permute.xlu0 %1448
      %1450 = vrot.lane.b32.xlu0 %v1420, 8
      %v1451 = vpop.permute.xlu0 %1450
      %1452 = vrot.lane.b32.xlu0 %v1427, 8
      %v1453 = vpop.permute.xlu0 %1452
      %1454 = vrot.lane.b32.xlu0 %v1434, 8
      %v1455 = vpop.permute.xlu0 %1454
      %1456 = vrot.lane.b32.xlu0 %v1441, 8
      %v1457 = vpop.permute.xlu0 %1456
      %v1458 = vrot.slane %v1378, 1
      %v1459 = vrot.slane %v1379, 1
      %v1460 = vrot.slane %v1380, 1
      %v1461 = vrot.slane %v1381, 1
      %v1462 = vrot.slane %v1382, 1
      %v1463 = vrot.slane %v1383, 1
      %v1464 = vrot.slane %v1384, 1
      %v1465 = vrot.slane %v1385, 1
      %1466 = vrot.lane.b32.xlu0 %v1458, 16
      %v1467 = vpop.permute.xlu0 %1466
      %1468 = vrot.lane.b32.xlu0 %v1459, 16
      %v1469 = vpop.permute.xlu0 %1468
      %1470 = vrot.lane.b32.xlu0 %v1460, 16
      %v1471 = vpop.permute.xlu0 %1470
      %1472 = vrot.lane.b32.xlu0 %v1461, 16
      %v1473 = vpop.permute.xlu0 %1472
      %1474 = vrot.lane.b32.xlu0 %v1462, 16
      %v1475 = vpop.permute.xlu0 %1474
      %1476 = vrot.lane.b32.xlu0 %v1463, 16
      %v1477 = vpop.permute.xlu0 %1476
      %1478 = vrot.lane.b32.xlu0 %v1464, 16
      %v1479 = vpop.permute.xlu0 %1478
      %1480 = vrot.lane.b32.xlu0 %v1465, 16
      %v1481 = vpop.permute.xlu0 %1480
      %v1484 = vsel %vm507, %v1330, %v1443
      %v1487 = vsel %vm507, %v1332, %v1445
      %v1490 = vsel %vm507, %v1334, %v1447
      %v1493 = vsel %vm507, %v1336, %v1449
      %v1496 = vsel %vm507, %v1338, %v1451
      %v1499 = vsel %vm507, %v1340, %v1453
      %v1502 = vsel %vm507, %v1342, %v1455
      %v1505 = vsel %vm507, %v1344, %v1457
      %v1507 = vsel %vm699, %v1484, %v1467
      %v1509 = vsel %vm699, %v1487, %v1469
      %v1511 = vsel %vm699, %v1490, %v1471
      %v1513 = vsel %vm699, %v1493, %v1473
      %v1515 = vsel %vm699, %v1496, %v1475
      %v1517 = vsel %vm699, %v1499, %v1477
      %v1519 = vsel %vm699, %v1502, %v1479
      %v1521 = vsel %vm699, %v1505, %v1481
      %v1522 = vld [vmem:[%s4] sm:$0xf]
      %v1523 = vld [vmem:[%s4 + $0x4] sm:$0xf]
      %v1524 = vld [vmem:[%s4 + $0x8] sm:$0xf]
      %s1525 = scalar_lea.vmem [#allocation2], 8
      %v1526 = vld [vmem:[%s1525] sm:$0xf]
      %v1527 = vld [vmem:[%s1525 + $0x4] sm:$0x1]
      %v1528 = vld [vmem:[%s1525 + $0x8] sm:$0xf]
      %v1529 = vld [vmem:[%s1525 + $0xc] sm:$0x1]
      %v1530 = vld [vmem:[%s1525 + $0x10] sm:$0xf]
      %v1531 = vld [vmem:[%s1525 + $0x14] sm:$0x1]
      %v1532 = vld [vmem:[%s1525 + $0x18] sm:$0xf]
      %v1533 = vld [vmem:[%s1525 + $0x1c] sm:$0x1]
      %v1534 = vld [vmem:[%s1525 + $0x20] sm:$0xf]
      %v1535 = vld [vmem:[%s1525 + $0x24] sm:$0x1]
      %v1536 = vld [vmem:[%s1525 + $0x28] sm:$0xf]
      %v1537 = vld [vmem:[%s1525 + $0x2c] sm:$0x1]
      %v1538 = vld [vmem:[%s1525 + $0x30] sm:$0xf]
      %v1539 = vld [vmem:[%s1525 + $0x34] sm:$0x1]
      %v1540 = vld [vmem:[%s1525 + $0x38] sm:$0xf]
      %v1541 = vld [vmem:[%s1525 + $0x3c] sm:$0x1]
      %v1558 = vunpack.c.l.b16 %v1526
      %v1559 = vunpack.c.l.b16 %v1527
      %v1560 = vunpack.c.l.b16 %v1528
      %v1561 = vunpack.c.l.b16 %v1529
      %v1562 = vunpack.c.l.b16 %v1530
      %v1563 = vunpack.c.l.b16 %v1531
      %v1564 = vunpack.c.l.b16 %v1532
      %v1565 = vunpack.c.l.b16 %v1533
      %v1566 = vunpack.c.l.b16 %v1534
      %v1567 = vunpack.c.l.b16 %v1535
      %v1568 = vunpack.c.l.b16 %v1536
      %v1569 = vunpack.c.l.b16 %v1537
      %v1570 = vunpack.c.l.b16 %v1538
      %v1571 = vunpack.c.l.b16 %v1539
      %v1572 = vunpack.c.l.b16 %v1540
      %v1573 = vunpack.c.l.b16 %v1541
      %v1574 = vpack.c.b16 %v1559, %v1558
      %v1575 = vpack.c.b16 %v1561, %v1560
      %v1576 = vpack.c.b16 %v1563, %v1562
      %v1577 = vpack.c.b16 %v1565, %v1564
      %v1578 = vpack.c.b16 %v1567, %v1566
      %v1579 = vpack.c.b16 %v1569, %v1568
      %v1580 = vpack.c.b16 %v1571, %v1570
      %v1581 = vpack.c.b16 %v1573, %v1572
      %v1583 = vshrl.u32 %v1574, 16
      %v1585 = vshll.u32 %v1574, 16
      %v1587 = vrot.slane %v1585, 1
      %v1588 = vor.u32 %v1583, %v1587
      %v1590 = vshrl.u32 %v1575, 16
      %v1592 = vshll.u32 %v1575, 16
      %v1594 = vrot.slane %v1592, 1
      %v1595 = vor.u32 %v1590, %v1594
      %v1597 = vshrl.u32 %v1576, 16
      %v1599 = vshll.u32 %v1576, 16
      %v1601 = vrot.slane %v1599, 1
      %v1602 = vor.u32 %v1597, %v1601
      %v1604 = vshrl.u32 %v1577, 16
      %v1606 = vshll.u32 %v1577, 16
      %v1608 = vrot.slane %v1606, 1
      %v1609 = vor.u32 %v1604, %v1608
      %v1611 = vshrl.u32 %v1578, 16
      %v1613 = vshll.u32 %v1578, 16
      %v1615 = vrot.slane %v1613, 1
      %v1616 = vor.u32 %v1611, %v1615
      %v1618 = vshrl.u32 %v1579, 16
      %v1620 = vshll.u32 %v1579, 16
      %v1622 = vrot.slane %v1620, 1
      %v1623 = vor.u32 %v1618, %v1622
      %v1625 = vshrl.u32 %v1580, 16
      %v1627 = vshll.u32 %v1580, 16
      %v1629 = vrot.slane %v1627, 1
      %v1630 = vor.u32 %v1625, %v1629
      %v1632 = vshrl.u32 %v1581, 16
      %v1634 = vshll.u32 %v1581, 16
      %v1636 = vrot.slane %v1634, 1
      %v1637 = vor.u32 %v1632, %v1636
      %1638 = vrot.lane.b32.xlu0 %v1588, 8
      %v1639 = vpop.permute.xlu0 %1638
      %1640 = vrot.lane.b32.xlu0 %v1595, 8
      %v1641 = vpop.permute.xlu0 %1640
      %1642 = vrot.lane.b32.xlu0 %v1602, 8
      %v1643 = vpop.permute.xlu0 %1642
      %1644 = vrot.lane.b32.xlu0 %v1609, 8
      %v1645 = vpop.permute.xlu0 %1644
      %1646 = vrot.lane.b32.xlu0 %v1616, 8
      %v1647 = vpop.permute.xlu0 %1646
      %1648 = vrot.lane.b32.xlu0 %v1623, 8
      %v1649 = vpop.permute.xlu0 %1648
      %1650 = vrot.lane.b32.xlu0 %v1630, 8
      %v1651 = vpop.permute.xlu0 %1650
      %1652 = vrot.lane.b32.xlu0 %v1637, 8
      %v1653 = vpop.permute.xlu0 %1652
      %v1654 = vrot.slane %v1574, 1
      %v1655 = vrot.slane %v1575, 1
      %v1656 = vrot.slane %v1576, 1
      %v1657 = vrot.slane %v1577, 1
      %v1658 = vrot.slane %v1578, 1
      %v1659 = vrot.slane %v1579, 1
      %v1660 = vrot.slane %v1580, 1
      %v1661 = vrot.slane %v1581, 1
      %1662 = vrot.lane.b32.xlu0 %v1654, 16
      %v1663 = vpop.permute.xlu0 %1662
      %1664 = vrot.lane.b32.xlu0 %v1655, 16
      %v1665 = vpop.permute.xlu0 %1664
      %1666 = vrot.lane.b32.xlu0 %v1656, 16
      %v1667 = vpop.permute.xlu0 %1666
      %1668 = vrot.lane.b32.xlu0 %v1657, 16
      %v1669 = vpop.permute.xlu0 %1668
      %1670 = vrot.lane.b32.xlu0 %v1658, 16
      %v1671 = vpop.permute.xlu0 %1670
      %1672 = vrot.lane.b32.xlu0 %v1659, 16
      %v1673 = vpop.permute.xlu0 %1672
      %1674 = vrot.lane.b32.xlu0 %v1660, 16
      %v1675 = vpop.permute.xlu0 %1674
      %1676 = vrot.lane.b32.xlu0 %v1661, 16
      %v1677 = vpop.permute.xlu0 %1676
      %v1680 = vsel %vm507, %v1526, %v1639
      %v1683 = vsel %vm507, %v1528, %v1641
      %v1686 = vsel %vm507, %v1530, %v1643
      %v1689 = vsel %vm507, %v1532, %v1645
      %v1692 = vsel %vm507, %v1534, %v1647
      %v1695 = vsel %vm507, %v1536, %v1649
      %v1698 = vsel %vm507, %v1538, %v1651
      %v1701 = vsel %vm507, %v1540, %v1653
      %v1703 = vsel %vm699, %v1680, %v1663
      %v1705 = vsel %vm699, %v1683, %v1665
      %v1707 = vsel %vm699, %v1686, %v1667
      %v1709 = vsel %vm699, %v1689, %v1669
      %v1711 = vsel %vm699, %v1692, %v1671
      %v1713 = vsel %vm699, %v1695, %v1673
      %v1715 = vsel %vm699, %v1698, %v1675
      %v1717 = vsel %vm699, %v1701, %v1677
      %s1718 = scalar_lea.vmem %s4, 12
      %v1719 = vld [vmem:[%s1718] sm:$0xf]
      %v1720 = vld [vmem:[%s1718 + $0x4] sm:$0xf]
      %v1721 = vld [vmem:[%s1718 + $0x8] sm:$0xf]
      %v1730 = vunpack.c.l.b16 %v1703
      %v1731 = vunpack.c.l.b16 %v1705
      %v1732 = vunpack.c.l.b16 %v1707
      %v1733 = vunpack.c.l.b16 %v1709
      %v1734 = vunpack.c.l.b16 %v1711
      %v1735 = vunpack.c.l.b16 %v1713
      %v1736 = vunpack.c.l.b16 %v1715
      %v1737 = vunpack.c.l.b16 %v1717
      %v1738 = vpack.c.b16 %v1731, %v1730
      %v1739 = vpack.c.b16 %v1733, %v1732
      %v1740 = vpack.c.b16 %v1735, %v1734
      %v1741 = vpack.c.b16 %v1737, %v1736
      %v1745 = vunpack.c.l.b16 %v1719
      %v1746 = vunpack.c.l.b16 %v1720
      %v1747 = vunpack.c.l.b16 %v1721
      %v1748 = vpack.c.b16 %v1746, %v1745
      %v1749 = vpack.c.b16 %v1747, %v1747
      %vm1751 = vcmask 195584
      %v1753 = vsel %vm1751, %v1738, 0
      %v1756 = vsel %vm1751, %v1739, 0
      %v1759 = vsel %vm1751, %v1740, 0
      %v1762 = vsel %vm1751, %v1741, 0
      %v1765 = vsel %vm1231, %v1749, 0
      %1767 = vmatprep.subr.bf16.mxu0 0
      %1768 = vmatpush1.bf16.msra.mxu0 %v1748
      %1769 = vmatprep.subr.bf16.mxu0 0
      %1770 = vmatpush1.bf16.msra.mxu0 %v1765
      %1771 = vmatprep.subr.bf16.mxu0 0
      %1772 = vmatpush1.bf16.msra.mxu0 0
      %1773 = vmatprep.subr.bf16.mxu0 0
      %1774 = vmatpush1.bf16.msra.mxu0 0
      %1775 = vmatprep.subr.bf16.mxu0 0
      %1776 = vmatpush1.bf16.msra.mxu0 0
      %1777 = vmatprep.subr.bf16.mxu0 0
      %1778 = vmatpush1.bf16.msra.mxu0 0
      %1779 = vmatprep.subr.bf16.mxu0 0
      %1780 = vmatpush1.bf16.msra.mxu0 0
      %1781 = vmatprep.subr.bf16.mxu0 0
      %1782 = vmatpush1.bf16.msra.mxu0 0
      %1783 = vmatprep.subr.bf16.mxu0 0
      %1784 = vmatpush1.bf16.msra.mxu0 0
      %1785 = vmatprep.subr.bf16.mxu0 0
      %1786 = vmatpush1.bf16.msra.mxu0 0
      %1787 = vmatprep.subr.bf16.mxu0 0
      %1788 = vmatpush1.bf16.msra.mxu0 0
      %1789 = vmatprep.subr.bf16.mxu0 0
      %1790 = vmatpush1.bf16.msra.mxu0 0
      %1791 = vmatprep.subr.bf16.mxu0 0
      %1792 = vmatpush1.bf16.msra.mxu0 0
      %1793 = vmatprep.subr.bf16.mxu0 0
      %1794 = vmatpush1.bf16.msra.mxu0 0
      %1795 = vmatprep.subr.bf16.mxu0 0
      %1796 = vmatpush1.bf16.msra.mxu0 0
      %1797 = vmatprep.subr.bf16.mxu0 0
      %1798 = vmatpush1.bf16.msra.mxu0 0
      %1799 = vmatprep.mubr.bf16.mxu0 0
      %1800 = vmatmul.mubr.bf16.gmra.mrb[0].mxu0 %v1753
      %v1801 = vpop.f32.mrb[0].mxu0
      %v1802 = vadd.f32 0.0, %v1801
      %v1803 = vpop.f32.mrb[0].mxu0
      %v1804 = vpop.f32.mrb[0].mxu0
      %v1805 = vadd.f32 0.0, %v1804
      %v1806 = vpop.f32.mrb[0].mxu0
      %1807 = vmatprep.mubr.bf16.mxu0 0
      %1808 = vmatmul.mubr.bf16.gmra.mrb[0].mxu0 %v1756
      %v1809 = vpop.f32.mrb[0].mxu0
      %v1810 = vadd.f32 0.0, %v1809
      %v1811 = vpop.f32.mrb[0].mxu0
      %v1812 = vpop.f32.mrb[0].mxu0
      %v1813 = vadd.f32 0.0, %v1812
      %v1814 = vpop.f32.mrb[0].mxu0
      %1815 = vmatprep.mubr.bf16.mxu0 0
      %1816 = vmatmul.mubr.bf16.gmra.mrb[0].mxu0 %v1759
      %v1817 = vpop.f32.mrb[0].mxu0
      %v1818 = vadd.f32 0.0, %v1817
      %v1819 = vpop.f32.mrb[0].mxu0
      %v1820 = vpop.f32.mrb[0].mxu0
      %v1821 = vadd.f32 0.0, %v1820
      %v1822 = vpop.f32.mrb[0].mxu0
      %1823 = vmatprep.mubr.bf16.mxu0 0
      %1824 = vmatmul.mubr.bf16.gmra.mrb[0].mxu0 %v1762
      %v1825 = vpop.f32.mrb[0].mxu0
      %v1826 = vadd.f32 0.0, %v1825
      %v1827 = vpop.f32.mrb[0].mxu0
      %v1828 = vpop.f32.mrb[0].mxu0
      %v1829 = vadd.f32 0.0, %v1828
      %v1830 = vpop.f32.mrb[0].mxu0
      %1831 = vdwg.mxu0
      %v1840 = vunpack.c.l.b16 %v1507
      %v1841 = vunpack.c.l.b16 %v1509
      %v1842 = vunpack.c.l.b16 %v1511
      %v1843 = vunpack.c.l.b16 %v1513
      %v1844 = vunpack.c.l.b16 %v1515
      %v1845 = vunpack.c.l.b16 %v1517
      %v1846 = vunpack.c.l.b16 %v1519
      %v1847 = vunpack.c.l.b16 %v1521
      %v1848 = vpack.c.b16 %v1841, %v1840
      %v1849 = vpack.c.b16 %v1843, %v1842
      %v1850 = vpack.c.b16 %v1845, %v1844
      %v1851 = vpack.c.b16 %v1847, %v1846
      %v1855 = vunpack.c.l.b16 %v1522
      %v1856 = vunpack.c.l.b16 %v1523
      %v1857 = vunpack.c.l.b16 %v1524
      %v1858 = vpack.c.b16 %v1856, %v1855
      %v1859 = vpack.c.b16 %v1857, %v1857
      %v1862 = vsel %vm1751, %v1848, 0
      %v1865 = vsel %vm1751, %v1849, 0
      %v1868 = vsel %vm1751, %v1850, 0
      %v1871 = vsel %vm1751, %v1851, 0
      %v1874 = vsel %vm1231, %v1859, 0
      %1876 = vmatprep.subr.bf16.mxu0 0
      %1877 = vmatpush1.bf16.msra.mxu0 %v1858
      %1878 = vmatprep.subr.bf16.mxu0 0
      %1879 = vmatpush1.bf16.msra.mxu0 %v1874
      %1880 = vmatprep.subr.bf16.mxu0 0
      %1881 = vmatpush1.bf16.msra.mxu0 0
      %1882 = vmatprep.subr.bf16.mxu0 0
      %1883 = vmatpush1.bf16.msra.mxu0 0
      %1884 = vmatprep.subr.bf16.mxu0 0
      %1885 = vmatpush1.bf16.msra.mxu0 0
      %1886 = vmatprep.subr.bf16.mxu0 0
      %1887 = vmatpush1.bf16.msra.mxu0 0
      %1888 = vmatprep.subr.bf16.mxu0 0
      %1889 = vmatpush1.bf16.msra.mxu0 0
      %1890 = vmatprep.subr.bf16.mxu0 0
      %1891 = vmatpush1.bf16.msra.mxu0 0
      %1892 = vmatprep.subr.bf16.mxu0 0
      %1893 = vmatpush1.bf16.msra.mxu0 0
      %1894 = vmatprep.subr.bf16.mxu0 0
      %1895 = vmatpush1.bf16.msra.mxu0 0
      %1896 = vmatprep.subr.bf16.mxu0 0
      %1897 = vmatpush1.bf16.msra.mxu0 0
      %1898 = vmatprep.subr.bf16.mxu0 0
      %1899 = vmatpush1.bf16.msra.mxu0 0
      %1900 = vmatprep.subr.bf16.mxu0 0
      %1901 = vmatpush1.bf16.msra.mxu0 0
      %1902 = vmatprep.subr.bf16.mxu0 0
      %1903 = vmatpush1.bf16.msra.mxu0 0
      %1904 = vmatprep.subr.bf16.mxu0 0
      %1905 = vmatpush1.bf16.msra.mxu0 0
      %1906 = vmatprep.subr.bf16.mxu0 0
      %1907 = vmatpush1.bf16.msra.mxu0 0
      %1908 = vmatprep.mubr.bf16.mxu0 0
      %1909 = vmatmul.mubr.bf16.gmra.mrb[0].mxu0 %v1862
      %v1910 = vpop.f32.mrb[0].mxu0
      %v1911 = vadd.f32 %v1802, %v1910
      %v1912 = vpop.f32.mrb[0].mxu0
      %v1913 = vpop.f32.mrb[0].mxu0
      %v1914 = vadd.f32 %v1805, %v1913
      %v1915 = vpop.f32.mrb[0].mxu0
      %1916 = vmatprep.mubr.bf16.mxu0 0
      %1917 = vmatmul.mubr.bf16.gmra.mrb[0].mxu0 %v1865
      %v1918 = vpop.f32.mrb[0].mxu0
      %v1919 = vadd.f32 %v1810, %v1918
      %v1920 = vpop.f32.mrb[0].mxu0
      %v1921 = vpop.f32.mrb[0].mxu0
      %v1922 = vadd.f32 %v1813, %v1921
      %v1923 = vpop.f32.mrb[0].mxu0
      %1924 = vmatprep.mubr.bf16.mxu0 0
      %1925 = vmatmul.mubr.bf16.gmra.mrb[0].mxu0 %v1868
      %v1926 = vpop.f32.mrb[0].mxu0
      %v1927 = vadd.f32 %v1818, %v1926
      %v1928 = vpop.f32.mrb[0].mxu0
      %v1929 = vpop.f32.mrb[0].mxu0
      %v1930 = vadd.f32 %v1821, %v1929
      %v1931 = vpop.f32.mrb[0].mxu0
      %1932 = vmatprep.mubr.bf16.mxu0 0
      %1933 = vmatmul.mubr.bf16.gmra.mrb[0].mxu0 %v1871
      %v1934 = vpop.f32.mrb[0].mxu0
      %v1935 = vadd.f32 %v1826, %v1934
      %v1936 = vpop.f32.mrb[0].mxu0
      %v1937 = vpop.f32.mrb[0].mxu0
      %v1938 = vadd.f32 %v1829, %v1937
      %v1939 = vpop.f32.mrb[0].mxu0
      %1940 = vdwg.mxu0
      %s1941 = scalar_lea.vmem [#allocation2], 16
      %v1942 = vld [vmem:[%s1941] sm:$0xf]
      %v1943 = vld [vmem:[%s1941 + $0x4] sm:$0x1]
      %v1944 = vld [vmem:[%s1941 + $0x8] sm:$0xf]
      %v1945 = vld [vmem:[%s1941 + $0xc] sm:$0x1]
      %v1946 = vld [vmem:[%s1941 + $0x10] sm:$0xf]
      %v1947 = vld [vmem:[%s1941 + $0x14] sm:$0x1]
      %v1948 = vld [vmem:[%s1941 + $0x18] sm:$0xf]
      %v1949 = vld [vmem:[%s1941 + $0x1c] sm:$0x1]
      %v1950 = vld [vmem:[%s1941 + $0x20] sm:$0xf]
      %v1951 = vld [vmem:[%s1941 + $0x24] sm:$0x1]
      %v1952 = vld [vmem:[%s1941 + $0x28] sm:$0xf]
      %v1953 = vld [vmem:[%s1941 + $0x2c] sm:$0x1]
      %v1954 = vld [vmem:[%s1941 + $0x30] sm:$0xf]
      %v1955 = vld [vmem:[%s1941 + $0x34] sm:$0x1]
      %v1956 = vld [vmem:[%s1941 + $0x38] sm:$0xf]
      %v1957 = vld [vmem:[%s1941 + $0x3c] sm:$0x1]
      %v1974 = vunpack.c.l.b16 %v1942
      %v1975 = vunpack.c.l.b16 %v1943
      %v1976 = vunpack.c.l.b16 %v1944
      %v1977 = vunpack.c.l.b16 %v1945
      %v1978 = vunpack.c.l.b16 %v1946
      %v1979 = vunpack.c.l.b16 %v1947
      %v1980 = vunpack.c.l.b16 %v1948
      %v1981 = vunpack.c.l.b16 %v1949
      %v1982 = vunpack.c.l.b16 %v1950
      %v1983 = vunpack.c.l.b16 %v1951
      %v1984 = vunpack.c.l.b16 %v1952
      %v1985 = vunpack.c.l.b16 %v1953
      %v1986 = vunpack.c.l.b16 %v1954
      %v1987 = vunpack.c.l.b16 %v1955
      %v1988 = vunpack.c.l.b16 %v1956
      %v1989 = vunpack.c.l.b16 %v1957
      %v1990 = vpack.c.b16 %v1975, %v1974
      %v1991 = vpack.c.b16 %v1977, %v1976
      %v1992 = vpack.c.b16 %v1979, %v1978
      %v1993 = vpack.c.b16 %v1981, %v1980
      %v1994 = vpack.c.b16 %v1983, %v1982
      %v1995 = vpack.c.b16 %v1985, %v1984
      %v1996 = vpack.c.b16 %v1987, %v1986
      %v1997 = vpack.c.b16 %v1989, %v1988
      %v1999 = vshrl.u32 %v1990, 16
      %v2001 = vshll.u32 %v1990, 16
      %v2003 = vrot.slane %v2001, 1
      %v2004 = vor.u32 %v1999, %v2003
      %v2006 = vshrl.u32 %v1991, 16
      %v2008 = vshll.u32 %v1991, 16
      %v2010 = vrot.slane %v2008, 1
      %v2011 = vor.u32 %v2006, %v2010
      %v2013 = vshrl.u32 %v1992, 16
      %v2015 = vshll.u32 %v1992, 16
      %v2017 = vrot.slane %v2015, 1
      %v2018 = vor.u32 %v2013, %v2017
      %v2020 = vshrl.u32 %v1993, 16
      %v2022 = vshll.u32 %v1993, 16
      %v2024 = vrot.slane %v2022, 1
      %v2025 = vor.u32 %v2020, %v2024
      %v2027 = vshrl.u32 %v1994, 16
      %v2029 = vshll.u32 %v1994, 16
      %v2031 = vrot.slane %v2029, 1
      %v2032 = vor.u32 %v2027, %v2031
      %v2034 = vshrl.u32 %v1995, 16
      %v2036 = vshll.u32 %v1995, 16
      %v2038 = vrot.slane %v2036, 1
      %v2039 = vor.u32 %v2034, %v2038
      %v2041 = vshrl.u32 %v1996, 16
      %v2043 = vshll.u32 %v1996, 16
      %v2045 = vrot.slane %v2043, 1
      %v2046 = vor.u32 %v2041, %v2045
      %v2048 = vshrl.u32 %v1997, 16
      %v2050 = vshll.u32 %v1997, 16
      %v2052 = vrot.slane %v2050, 1
      %v2053 = vor.u32 %v2048, %v2052
      %2054 = vrot.lane.b32.xlu0 %v2004, 8
      %v2055 = vpop.permute.xlu0 %2054
      %2056 = vrot.lane.b32.xlu0 %v2011, 8
      %v2057 = vpop.permute.xlu0 %2056
      %2058 = vrot.lane.b32.xlu0 %v2018, 8
      %v2059 = vpop.permute.xlu0 %2058
      %2060 = vrot.lane.b32.xlu0 %v2025, 8
      %v2061 = vpop.permute.xlu0 %2060
      %2062 = vrot.lane.b32.xlu0 %v2032, 8
      %v2063 = vpop.permute.xlu0 %2062
      %2064 = vrot.lane.b32.xlu0 %v2039, 8
      %v2065 = vpop.permute.xlu0 %2064
      %2066 = vrot.lane.b32.xlu0 %v2046, 8
      %v2067 = vpop.permute.xlu0 %2066
      %2068 = vrot.lane.b32.xlu0 %v2053, 8
      %v2069 = vpop.permute.xlu0 %2068
      %v2070 = vrot.slane %v1990, 1
      %v2071 = vrot.slane %v1991, 1
      %v2072 = vrot.slane %v1992, 1
      %v2073 = vrot.slane %v1993, 1
      %v2074 = vrot.slane %v1994, 1
      %v2075 = vrot.slane %v1995, 1
      %v2076 = vrot.slane %v1996, 1
      %v2077 = vrot.slane %v1997, 1
      %2078 = vrot.lane.b32.xlu0 %v2070, 16
      %v2079 = vpop.permute.xlu0 %2078
      %2080 = vrot.lane.b32.xlu0 %v2071, 16
      %v2081 = vpop.permute.xlu0 %2080
      %2082 = vrot.lane.b32.xlu0 %v2072, 16
      %v2083 = vpop.permute.xlu0 %2082
      %2084 = vrot.lane.b32.xlu0 %v2073, 16
      %v2085 = vpop.permute.xlu0 %2084
      %2086 = vrot.lane.b32.xlu0 %v2074, 16
      %v2087 = vpop.permute.xlu0 %2086
      %2088 = vrot.lane.b32.xlu0 %v2075, 16
      %v2089 = vpop.permute.xlu0 %2088
      %2090 = vrot.lane.b32.xlu0 %v2076, 16
      %v2091 = vpop.permute.xlu0 %2090
      %2092 = vrot.lane.b32.xlu0 %v2077, 16
      %v2093 = vpop.permute.xlu0 %2092
      %v2096 = vsel %vm507, %v1942, %v2055
      %v2099 = vsel %vm507, %v1944, %v2057
      %v2102 = vsel %vm507, %v1946, %v2059
      %v2105 = vsel %vm507, %v1948, %v2061
      %v2108 = vsel %vm507, %v1950, %v2063
      %v2111 = vsel %vm507, %v1952, %v2065
      %v2114 = vsel %vm507, %v1954, %v2067
      %v2117 = vsel %vm507, %v1956, %v2069
      %v2119 = vsel %vm699, %v2096, %v2079
      %v2121 = vsel %vm699, %v2099, %v2081
      %v2123 = vsel %vm699, %v2102, %v2083
      %v2125 = vsel %vm699, %v2105, %v2085
      %v2127 = vsel %vm699, %v2108, %v2087
      %v2129 = vsel %vm699, %v2111, %v2089
      %v2131 = vsel %vm699, %v2114, %v2091
      %v2133 = vsel %vm699, %v2117, %v2093
      %s2134 = scalar_lea.vmem %s4, 24
      %v2135 = vld [vmem:[%s2134] sm:$0xf]
      %v2136 = vld [vmem:[%s2134 + $0x4] sm:$0xf]
      %v2137 = vld [vmem:[%s2134 + $0x8] sm:$0xf]
      %v2146 = vunpack.c.l.b16 %v2119
      %v2147 = vunpack.c.l.b16 %v2121
      %v2148 = vunpack.c.l.b16 %v2123
      %v2149 = vunpack.c.l.b16 %v2125
      %v2150 = vunpack.c.l.b16 %v2127
      %v2151 = vunpack.c.l.b16 %v2129
      %v2152 = vunpack.c.l.b16 %v2131
      %v2153 = vunpack.c.l.b16 %v2133
      %v2154 = vpack.c.b16 %v2147, %v2146
      %v2155 = vpack.c.b16 %v2149, %v2148
      %v2156 = vpack.c.b16 %v2151, %v2150
      %v2157 = vpack.c.b16 %v2153, %v2152
      %v2161 = vunpack.c.l.b16 %v2135
      %v2162 = vunpack.c.l.b16 %v2136
      %v2163 = vunpack.c.l.b16 %v2137
      %v2164 = vpack.c.b16 %v2162, %v2161
      %v2165 = vpack.c.b16 %v2163, %v2163
      %v2168 = vsel %vm1751, %v2154, 0
      %v2171 = vsel %vm1751, %v2155, 0
      %v2174 = vsel %vm1751, %v2156, 0
      %v2177 = vsel %vm1751, %v2157, 0
      %v2180 = vsel %vm1231, %v2165, 0
      %2182 = vmatprep.subr.bf16.mxu0 0
      %2183 = vmatpush1.bf16.msra.mxu0 %v2164
      %2184 = vmatprep.subr.bf16.mxu0 0
      %2185 = vmatpush1.bf16.msra.mxu0 %v2180
      %2186 = vmatprep.subr.bf16.mxu0 0
      %2187 = vmatpush1.bf16.msra.mxu0 0
      %2188 = vmatprep.subr.bf16.mxu0 0
      %2189 = vmatpush1.bf16.msra.mxu0 0
      %2190 = vmatprep.subr.bf16.mxu0 0
      %2191 = vmatpush1.bf16.msra.mxu0 0
      %2192 = vmatprep.subr.bf16.mxu0 0
      %2193 = vmatpush1.bf16.msra.mxu0 0
      %2194 = vmatprep.subr.bf16.mxu0 0
      %2195 = vmatpush1.bf16.msra.mxu0 0
      %2196 = vmatprep.subr.bf16.mxu0 0
      %2197 = vmatpush1.bf16.msra.mxu0 0
      %2198 = vmatprep.subr.bf16.mxu0 0
      %2199 = vmatpush1.bf16.msra.mxu0 0
      %2200 = vmatprep.subr.bf16.mxu0 0
      %2201 = vmatpush1.bf16.msra.mxu0 0
      %2202 = vmatprep.subr.bf16.mxu0 0
      %2203 = vmatpush1.bf16.msra.mxu0 0
      %2204 = vmatprep.subr.bf16.mxu0 0
      %2205 = vmatpush1.bf16.msra.mxu0 0
      %2206 = vmatprep.subr.bf16.mxu0 0
      %2207 = vmatpush1.bf16.msra.mxu0 0
      %2208 = vmatprep.subr.bf16.mxu0 0
      %2209 = vmatpush1.bf16.msra.mxu0 0
      %2210 = vmatprep.subr.bf16.mxu0 0
      %2211 = vmatpush1.bf16.msra.mxu0 0
      %2212 = vmatprep.subr.bf16.mxu0 0
      %2213 = vmatpush1.bf16.msra.mxu0 0
      %2214 = vmatprep.mubr.bf16.mxu0 0
      %2215 = vmatmul.mubr.bf16.gmra.mrb[0].mxu0 %v2168
      %v2216 = vpop.f32.mrb[0].mxu0
      %v2217 = vadd.f32 0.0, %v2216
      %v2218 = vpop.f32.mrb[0].mxu0
      %v2219 = vpop.f32.mrb[0].mxu0
      %v2220 = vadd.f32 0.0, %v2219
      %v2221 = vpop.f32.mrb[0].mxu0
      %2222 = vmatprep.mubr.bf16.mxu0 0
      %2223 = vmatmul.mubr.bf16.gmra.mrb[0].mxu0 %v2171
      %v2224 = vpop.f32.mrb[0].mxu0
      %v2225 = vadd.f32 0.0, %v2224
      %v2226 = vpop.f32.mrb[0].mxu0
      %v2227 = vpop.f32.mrb[0].mxu0
      %v2228 = vadd.f32 0.0, %v2227
      %v2229 = vpop.f32.mrb[0].mxu0
      %2230 = vmatprep.mubr.bf16.mxu0 0
      %2231 = vmatmul.mubr.bf16.gmra.mrb[0].mxu0 %v2174
      %v2232 = vpop.f32.mrb[0].mxu0
      %v2233 = vadd.f32 0.0, %v2232
      %v2234 = vpop.f32.mrb[0].mxu0
      %v2235 = vpop.f32.mrb[0].mxu0
      %v2236 = vadd.f32 0.0, %v2235
      %v2237 = vpop.f32.mrb[0].mxu0
      %2238 = vmatprep.mubr.bf16.mxu0 0
      %2239 = vmatmul.mubr.bf16.gmra.mrb[0].mxu0 %v2177
      %v2240 = vpop.f32.mrb[0].mxu0
      %v2241 = vadd.f32 0.0, %v2240
      %v2242 = vpop.f32.mrb[0].mxu0
      %v2243 = vpop.f32.mrb[0].mxu0
      %v2244 = vadd.f32 0.0, %v2243
      %v2245 = vpop.f32.mrb[0].mxu0
      %2246 = vdwg.mxu0
      %v2247 = vadd.f32 %v1911, %v2217
      %v2248 = vadd.f32 %v1914, %v2220
      %v2249 = vadd.f32 %v1919, %v2225
      %v2250 = vadd.f32 %v1922, %v2228
      %v2251 = vadd.f32 %v1927, %v2233
      %v2252 = vadd.f32 %v1930, %v2236
      %v2253 = vadd.f32 %v1935, %v2241
      %v2254 = vadd.f32 %v1938, %v2244
      %v2255 = vld [vmem:[%s5] sm:$0x1]
      %v2257 = vlaneseq
      %v2258 = vshrl.u32 %v2257, 7
      %v2259 = vsub.s32 0, %v2258
      %v2260 = vrot.slane %v2255, %v2259
      %v2262 = vmul.f32 %v2247, %v2260
      %v2263 = vmul.f32 %v2248, %v2260
      %v2264 = vmul.f32 %v2249, %v2260
      %v2265 = vmul.f32 %v2250, %v2260
      %v2266 = vmul.f32 %v2251, %v2260
      %v2267 = vmul.f32 %v2252, %v2260
      %v2268 = vmul.f32 %v2253, %v2260
      %v2269 = vmul.f32 %v2254, %v2260
      %v2270 = vld [vmem:[%s6] sm:$0x1]
      %v2272 = vlaneseq
      %v2273 = vshrl.u32 %v2272, 7
      %v2274 = vsub.s32 0, %v2273
      %v2275 = vrot.slane %v2270, %v2274
      %v2277 = vadd.f32 %v2262, %v2275
      %v2278 = vadd.f32 %v2263, %v2275
      %v2279 = vadd.f32 %v2264, %v2275
      %v2280 = vadd.f32 %v2265, %v2275
      %v2281 = vadd.f32 %v2266, %v2275
      %v2282 = vadd.f32 %v2267, %v2275
      %v2283 = vadd.f32 %v2268, %v2275
      %v2284 = vadd.f32 %v2269, %v2275
      %v2285 = vadd.f32 %v2277, %v1322
      %v2286 = vadd.f32 %v2278, %v1323
      %v2287 = vadd.f32 %v2279, %v1324
      %v2288 = vadd.f32 %v2280, %v1325
      %v2289 = vadd.f32 %v2281, %v1326
      %v2290 = vadd.f32 %v2282, %v1327
      %v2291 = vadd.f32 %v2283, %v1328
      %v2292 = vadd.f32 %v2284, %v1329
      %v2293 = vmax.f32 %v2285, 0.0
      %v2294 = vmax.f32 %v2286, 0.0
      %v2295 = vmax.f32 %v2287, 0.0
      %v2296 = vmax.f32 %v2288, 0.0
      %v2297 = vmax.f32 %v2289, 0.0
      %v2298 = vmax.f32 %v2290, 0.0
      %v2299 = vmax.f32 %v2291, 0.0
      %v2300 = vmax.f32 %v2292, 0.0
      %v2301 = vpack.c.bf16 %v2294, %v2293
      %v2302 = vpack.c.bf16 %v2296, %v2295
      %v2303 = vpack.c.bf16 %v2298, %v2297
      %v2304 = vpack.c.bf16 %v2300, %v2299
      %v2309 = vunpack.c.l.b16 %v2301
      %v2310 = vunpack.c.h.b16 %v2301
      %v2311 = vunpack.c.l.b16 %v2302
      %v2312 = vunpack.c.h.b16 %v2302
      %v2313 = vunpack.c.l.b16 %v2303
      %v2314 = vunpack.c.h.b16 %v2303
      %v2315 = vunpack.c.l.b16 %v2304
      %v2316 = vunpack.c.h.b16 %v2304
      %v2317 = vpack.c.b16 %v2309, %v2309
      %v2318 = vpack.c.b16 %v2310, %v2310
      %v2319 = vpack.c.b16 %v2311, %v2311
      %v2320 = vpack.c.b16 %v2312, %v2312
      %v2321 = vpack.c.b16 %v2313, %v2313
      %v2322 = vpack.c.b16 %v2314, %v2314
      %v2323 = vpack.c.b16 %v2315, %v2315
      %v2324 = vpack.c.b16 %v2316, %v2316
      %2333 = vst.msk [vmem:[%s359] sm:$0xf] %vm1192, %v2317
      %2334 = vst.msk [vmem:[%s359 + $0x4] sm:$0xf] %vm1192, %v2318
      %2335 = vst.msk [vmem:[%s359 + $0x8] sm:$0xf] %vm1192, %v2319
      %2336 = vst.msk [vmem:[%s359 + $0xc] sm:$0xf] %vm1192, %v2320
      %2337 = vst.msk [vmem:[%s359 + $0x10] sm:$0xf] %vm1192, %v2321
      %2338 = vst.msk [vmem:[%s359 + $0x14] sm:$0xf] %vm1192, %v2322
      %2339 = vst.msk [vmem:[%s359 + $0x18] sm:$0xf] %vm1192, %v2323
      %2340 = vst.msk [vmem:[%s359 + $0x1c] sm:$0xf] %vm1192, %v2324
      %p2341 = scmp.lt.s32.totalorder %s21, 1
      %s2342 = scalar_select %p2341, %s21, 1
      %s2343 = smul.addr %s2342, 8
      %s2344 = smul.addr %s2343, 4
      %s2345 = scalar_lea.vmem %s10, %s2344
      // Predicated region
      $region61: #{basic_block_forward.1} parent=59 // pred_check
        %p2346 = pneg %p254
      $region62: #{basic_block_forward.1} parent=59 // pred_check_branch
        %2348 = sbr.rel (%p2346) target = $region64
      $region63: #{basic_block_forward.1} parent=59 // pred_region
        _
      $region64: #{basic_block_forward.1} parent=59 // pred_fallthru
        _
    $region60: #{basic_block_forward.1} parent=5 // pred_fallthru
      _
    %p2349 = scmp.le.s32.totalorder 2, %s16
    // Predicated region
    $region65: #{basic_block_forward.1} parent=5 // pred_check
      %p2350 = pneg %p2349
    $region66: #{basic_block_forward.1} parent=5 // pred_check_branch
      %2352 = sbr.rel (%p2350) target = $region68
    $region67: #{basic_block_forward.1} parent=5 // pred_region
      %s2353 = ssub.s32 %s16, 2
      // Predicated region
      $region69: #{basic_block_forward.1} parent=67 // pred_check
        %p2354 = pneg %p260
      $region70: #{basic_block_forward.1} parent=67 // pred_check_branch
        %2356 = sbr.rel (%p2354) target = $region72
      $region71: #{basic_block_forward.1} parent=67 // pred_region
        %p2357 = scmp.lt.s32.totalorder %s22, 1
        %s2358 = scalar_select %p2357, %s22, 1
        %s2359 = smul.addr %s2358, 8
        %s2360 = smul.addr %s2359, 4
        %s2361 = scalar_lea.vmem %s10, %s2360
      $region72: #{basic_block_forward.1} parent=67 // pred_fallthru
        _
    $region68: #{basic_block_forward.1} parent=5 // pred_fallthru
      _
  $region6: #{basic_block_forward.1} parent=0 // loop_footer
    %s20 = sadd.s32 1, %s16
  $region7: #{basic_block_forward.1} parent=0 // loop_footer_branch
    %15 = sbr.rel target = $region3
  $region8: #{basic_block_forward.1} parent=0 // loop_exit
    _

</llo_original>
